<compile_context>
chip_gen: v6e
topology: v6e:2x2x1
jax: 0.10.0
libtpu: 0.0.40
codegen_flags: <defaults>
</compile_context>

<pallas_src>
import math

import jax
import jax.numpy as jnp
from jax.experimental import pallas as pl
from jax.experimental.pallas import tpu as pltpu

# ---------------- config (small synthetic shapes) ----------------
B = 2
IMG_C = 3
IMG_SIZE = 16
HIDDEN_CH = 32           # channels of the synthetic backbone hidden layer
PROJ_SIZE = 32           # projection_size   (256 in the reference; small here)
PROJ_HIDDEN = 64         # projection_hidden_size (2048 in the reference)
POOL = 4                 # backbone downsample -> 4x4 projection feature map
HP = WP = IMG_SIZE // POOL
N_PIX = HP * WP          # 16 pixels per sample in the projection map
VIEW_ROWS = B * N_PIX    # 32 rows per view (rows ordered (sample, pixel))
ROWS = 2 * VIEW_ROWS     # 64 rows: [view one ; view two]
DIST_THRES = 0.1
SIM_TEMP = 0.3
INV_TEMP = 1.0 / SIM_TEMP
ALPHA = 1.0
PPM_GAMMA = 2            # gamma == 2 hard-coded as a square inside the kernel
EPS_COS = 1e-8           # F.cosine_similarity eps (per-row guard; see note below)
EPS_PDIST = 1e-6         # nn.PairwiseDistance eps
BN_EPS = 1e-5


# ============================ fused Pallas kernel ============================

def _l2norm_rows(x):
    # rows / max(||row||, eps)  (F.cosine_similarity guards max(||a||*||b||, eps);
    # identical for non-degenerate rows).
    s = jnp.sum(x * x, axis=1, keepdims=True)
    return x * jax.lax.rsqrt(jnp.maximum(s, EPS_COS * EPS_COS))


def _sum_all(x):
    # full reduction kept as a (1, 1) vector value (no scalar extraction).
    return jnp.sum(jnp.sum(x, axis=1, keepdims=True), axis=0, keepdims=True)


def pixel_cl_kernel(x_ref, sel_ref, w1_ref, b1_ref, g_ref, beta_ref,
                    w2_ref, b2_ref, wt_ref, bt_ref,
                    ppm_mask_ref, numer12_ref, denom12_ref, numer_both_ref,
                    inv2cnt_ref, loss_ref):
    f32 = jnp.float32
    dn_t = (((1,), (1,)), ((), ()))      # (n, c) x (m, c) -> (n, m)

    x = x_ref[...]                        # (ROWS, IMG_C)  both views stacked
    sel = sel_ref[...]                    # (ROWS, 1)      1.0 on view-one rows
    w1 = w1_ref[...]                      # (IMG_C, PROJ_HIDDEN)  backbone folded in
    b1 = b1_ref[...]
    g = g_ref[...]
    beta = beta_ref[...]
    w2 = w2_ref[...]
    b2 = b2_ref[...]
    wt = wt_ref[...]
    bt = bt_ref[...]
    ppm_mask = ppm_mask_ref[...]          # (ROWS, ROWS) same-view & same-sample
    numer12 = numer12_ref[...]            # positives, view1 rows x view2 cols
    denom12 = denom12_ref[...]            # same-sample, view1 rows x view2 cols
    numer_both = numer_both_ref[...]      # positives, both directions (disjoint blocks)
    inv_2cnt = inv2cnt_ref[...]           # (1, 1) = 1 / (2 * B * sum(pos_mask))

    # ---- projector MLP; the synthetic backbone 1x1 conv is pre-folded into w1/b1 ----
    h = jnp.dot(x, w1, preferred_element_type=f32) + b1            # (ROWS, PROJ_HIDDEN)

    # BatchNorm2d with training-mode batch stats, computed PER VIEW (per row
    # half) via the 0/1 selector column; two-pass variance (no E[x^2]-E[x]^2
    # cancellation), blended back per row — no slicing / concat.
    inv_n = 1.0 / VIEW_ROWS
    s_all = jnp.sum(h, axis=0, keepdims=True)
    s_one = jnp.sum(h * sel, axis=0, keepdims=True)
    m1 = s_one * inv_n
    m2 = (s_all - s_one) * inv_n
    mean = m2 + sel * (m1 - m2)                                    # (ROWS, PROJ_HIDDEN)
    d = h - mean
    dd = d * d
    q_all = jnp.sum(dd, axis=0, keepdims=True)
    q_one = jnp.sum(dd * sel, axis=0, keepdims=True)
    v1 = q_one * inv_n
    v2 = (q_all - q_one) * inv_n
    var = v2 + sel * (v1 - v2)
    act = jnp.maximum(d * jax.lax.rsqrt(var + BN_EPS) * g + beta, 0.0)   # ReLU

    proj = jnp.dot(act, w2, preferred_element_type=f32) + b2       # (ROWS, PROJ_SIZE)

    # ---- one cosine-similarity matrix shared by PPM and the contrastive loss ----
    proj_n = _l2norm_rows(proj)
    sim = jax.lax.dot_general(proj_n, proj_n, dn_t,
                              preferred_element_type=f32)          # (ROWS, ROWS)

    # pixel propagation: relu(cos)^gamma (gamma==2), restricted to same
    # view & sample (block-diagonal mask), times the transform-net output.
    t = jnp.dot(proj, wt, preferred_element_type=f32) + bt         # (ROWS, PROJ_SIZE)
    sim_pos = jnp.maximum(sim, 0.0)
    ppm_sim = sim_pos * sim_pos * ppm_mask
    prop = jnp.dot(ppm_sim, t, preferred_element_type=f32)         # (ROWS, PROJ_SIZE)
    prop_n = _l2norm_rows(prop)
    ps = jax.lax.dot_general(prop_n, proj_n, dn_t,
                             preferred_element_type=f32)           # (ROWS, ROWS)

    # contrastive pixel loss.  Target encoder is a deepcopy of the online
    # encoder made during this forward, so target projections equal online
    # ones; the 2->1 exp/mask sums are the exact transposes of 1->2, hence
    # only one direction needs reducing.  exp over unused blocks rides the
    # otherwise idle EUP slot.
    e = jnp.exp(sim * INV_TEMP)
    m12 = _sum_all(e * numer12)           # masked (positive) numerator
    t12 = _sum_all(e * denom12)           # same-sample denominator
    p_sum = _sum_all(ps * numer_both)     # both pixpro directions in one sum

    loss_pix = -jnp.log(m12 / t12)        # == mean of the two identical directions
    loss_pixpro = -p_sum * inv_2cnt       # == mean of the two masked means
    # final combination is the PRODUCT, exactly as in the reference source:
    #   loss = loss_pix * self.alpha * loss_pixpro
    loss = loss_pix * ALPHA * loss_pixpro                          # (1, 1)
    # lane-dense (1, 128) output; host reads element [0, 0].
    loss_ref[...] = jnp.broadcast_to(loss, (1, 128)).astype(loss_ref.dtype)


def fused_pixel_cl(x_all, sel, params, masks, inv_2cnt):
    vmem = pl.BlockSpec(memory_space=pltpu.MemorySpace.VMEM)
    args = (x_all, sel,
            params['w1f'], params['b1f'], params['bn_g'], params['bn_b'],
            params['w2'], params['b2'], params['wt'], params['bt'],
            masks['ppm'], masks['numer12'], masks['denom12'], masks['numer_both'],
            inv_2cnt)
    out = pl.pallas_call(
        pixel_cl_kernel,
        out_shape=jax.ShapeDtypeStruct((1, 128), jnp.float32),
        in_specs=[vmem] * len(args),
        out_specs=vmem,
    )(*args)
    return out[0, 0]


# ============================ JAX glue ============================

def nearest_resize(img, out_h, out_w):
    # F.interpolate(mode='nearest'): src = floor(dst * in / out)
    h, w = img.shape[2], img.shape[3]
    ys = (jnp.arange(out_h) * h) // out_h
    xs = (jnp.arange(out_w) * w) // out_w
    return img[:, :, ys, :][:, :, :, xs]


def cutout_and_resize(img, coords, out_hw):
    (y0, y1), (x0, x1) = coords
    cut = img[:, :, y0:y1, x0:x1]
    return nearest_resize(cut, out_hw[0], out_hw[1])


def pixel_cl_forward(x, params):
    # TODO(synk): random Kornia augmentations (jitter/grayscale/flip/blur/crop/
    # normalize) are stochastic host-side preprocessing; identity is used here.
    image_one, image_two = x, x
    # TODO(synk): cutout_coordinates is random in the reference; fixed deterministically.
    cut1 = ((2, 11), (3, 12))
    cut2 = ((4, 13), (1, 10))

    img1 = cutout_and_resize(image_one, cut1, (IMG_SIZE, IMG_SIZE))
    img2 = cutout_and_resize(image_two, cut2, (IMG_SIZE, IMG_SIZE))

    def pooled_rows(img):
        # synthetic backbone stem: 4x4 avg-pool, flattened to channels-last
        # rows ordered (b, h, w); the 1x1 convs run inside the fused kernel.
        pooled = img.reshape(B, IMG_C, HP, POOL, WP, POOL).mean(axis=(3, 5))
        return pooled.transpose(0, 2, 3, 1).reshape(VIEW_ROWS, IMG_C)

    x_all = jnp.concatenate([pooled_rows(img1), pooled_rows(img2)], axis=0)  # (ROWS, IMG_C)

    # fold the synthetic backbone 1x1 conv into the projector's first conv
    # (both are linear maps with no nonlinearity in between -> exact).
    w1f = params['wb'] @ params['w1']                       # (IMG_C, PROJ_HIDDEN)
    b1f = params['bb'] @ params['w1'] + params['b1']        # (1, PROJ_HIDDEN)

    # pixel-coordinate positive mask (host glue, mirroring the reference)
    coords = jnp.stack(jnp.meshgrid(jnp.arange(IMG_SIZE), jnp.arange(IMG_SIZE),
                                    indexing='ij'), axis=0)[None].astype(jnp.float32)
    coords = coords / math.sqrt(IMG_SIZE ** 2 + IMG_SIZE ** 2)
    pc1 = cutout_and_resize(coords, cut1, (HP, WP)).transpose(0, 2, 3, 1).reshape(-1, 2)
    pc2 = cutout_and_resize(coords, cut2, (HP, WP)).transpose(0, 2, 3, 1).reshape(-1, 2)
    diff = pc1[None, :, :] - pc2[:, None, :]       # [i, j] = coors_one[j] - coors_two[i]
    dist = jnp.sqrt(jnp.sum((diff + EPS_PDIST) ** 2, axis=-1))
    pos12 = (dist < DIST_THRES).astype(jnp.float32)          # (N_PIX, N_PIX)

    # (ROWS, ROWS) block masks, block order [view1 ; view2], rows within a
    # view ordered (sample, pixel).
    eye_b = jnp.eye(B, dtype=jnp.float32)
    zero = jnp.zeros((VIEW_ROWS, VIEW_ROWS), jnp.float32)
    same_sample = jnp.kron(eye_b, jnp.ones((N_PIX, N_PIX), jnp.float32))
    numer12_blk = jnp.kron(eye_b, pos12)
    numer21_blk = jnp.kron(eye_b, pos12.T)

    def block2x2(a, b_, c, d):
        return jnp.concatenate([jnp.concatenate([a, b_], axis=1),
                                jnp.concatenate([c, d], axis=1)], axis=0)

    masks = {
        'ppm': block2x2(same_sample, zero, zero, same_sample),
        'numer12': block2x2(zero, numer12_blk, zero, zero),
        'denom12': block2x2(zero, same_sample, zero, zero),
        'numer_both': block2x2(zero, numer12_blk, numer21_blk, zero),
    }

    cnt = jnp.float32(B) * jnp.sum(pos12)                    # B * num positives per direction
    inv_2cnt = jnp.reshape(1.0 / (2.0 * cnt), (1, 1))

    sel = jnp.concatenate([jnp.ones((VIEW_ROWS, 1), jnp.float32),
                           jnp.zeros((VIEW_ROWS, 1), jnp.float32)], axis=0)

    folded = dict(params, w1f=w1f, b1f=b1f)
    return fused_pixel_cl(x_all, sel, folded, masks, inv_2cnt)


def init_params(key):
    ks = jax.random.split(key, 6)

    def init(k, shape, scale=0.2):
        return (scale * jax.random.normal(k, shape)).astype(jnp.float32)

    return {
        'wb': init(ks[0], (IMG_C, HIDDEN_CH)),            # backbone 1x1 conv
        'bb': init(ks[1], (1, HIDDEN_CH), 0.01),
        'w1': init(ks[2], (HIDDEN_CH, PROJ_HIDDEN)),      # projector MLP
        'b1': jnp.zeros((1, PROJ_HIDDEN), jnp.float32),
        'bn_g': jnp.ones((1, PROJ_HIDDEN), jnp.float32),  # BatchNorm affine init
        'bn_b': jnp.zeros((1, PROJ_HIDDEN), jnp.float32),
        'w2': init(ks[3], (PROJ_HIDDEN, PROJ_SIZE)),
        'b2': jnp.zeros((1, PROJ_SIZE), jnp.float32),
        'wt': init(ks[4], (PROJ_SIZE, PROJ_SIZE)),        # PPM transform_net (1 layer)
        'bt': init(ks[5], (1, PROJ_SIZE), 0.01),
    }


if __name__ == "__main__":
    key = jax.random.PRNGKey(0)
    kx, kp = jax.random.split(key)
    x = jax.random.normal(kx, (B, IMG_C, IMG_SIZE, IMG_SIZE), dtype=jnp.float32)
    params = init_params(kp)

    loss = jax.jit(pixel_cl_forward)(x, params)
    loss = jax.block_until_ready(loss)
    assert bool(jnp.isfinite(loss)), "loss is not finite"
    print("KERNEL_OK")
</pallas_src>

<mosaic_0001>
module attributes {stable_mosaic.version = 11 : i64} {
  func.func @pixel_cl_kernel(%arg0: memref<64x3xf32, #tpu.memory_space<vmem>>, %arg1: memref<64x1xf32, #tpu.memory_space<vmem>>, %arg2: memref<3x64xf32, #tpu.memory_space<vmem>>, %arg3: memref<1x64xf32, #tpu.memory_space<vmem>>, %arg4: memref<1x64xf32, #tpu.memory_space<vmem>>, %arg5: memref<1x64xf32, #tpu.memory_space<vmem>>, %arg6: memref<64x32xf32, #tpu.memory_space<vmem>>, %arg7: memref<1x32xf32, #tpu.memory_space<vmem>>, %arg8: memref<32x32xf32, #tpu.memory_space<vmem>>, %arg9: memref<1x32xf32, #tpu.memory_space<vmem>>, %arg10: memref<64x64xf32, #tpu.memory_space<vmem>>, %arg11: memref<64x64xf32, #tpu.memory_space<vmem>>, %arg12: memref<64x64xf32, #tpu.memory_space<vmem>>, %arg13: memref<64x64xf32, #tpu.memory_space<vmem>>, %arg14: memref<1x1xf32, #tpu.memory_space<vmem>>, %arg15: memref<1x128xf32, #tpu.memory_space<vmem>>) attributes {dimension_semantics = [], scalar_prefetch = 0 : i64, scratch_operands = 0 : i64, tpu.core_type = #tpu.core_type<tc>} {
    %c0 = arith.constant 0 : index
    %c0_0 = arith.constant 0 : index
    %0 = vector.load %arg0[%c0, %c0_0] : memref<64x3xf32, #tpu.memory_space<vmem>>, vector<64x3xf32>
    %c0_1 = arith.constant 0 : index
    %c0_2 = arith.constant 0 : index
    %1 = vector.load %arg1[%c0_1, %c0_2] : memref<64x1xf32, #tpu.memory_space<vmem>>, vector<64x1xf32>
    %c0_3 = arith.constant 0 : index
    %c0_4 = arith.constant 0 : index
    %2 = vector.load %arg2[%c0_3, %c0_4] : memref<3x64xf32, #tpu.memory_space<vmem>>, vector<3x64xf32>
    %c0_5 = arith.constant 0 : index
    %c0_6 = arith.constant 0 : index
    %3 = vector.load %arg3[%c0_5, %c0_6] : memref<1x64xf32, #tpu.memory_space<vmem>>, vector<1x64xf32>
    %c0_7 = arith.constant 0 : index
    %c0_8 = arith.constant 0 : index
    %4 = vector.load %arg4[%c0_7, %c0_8] : memref<1x64xf32, #tpu.memory_space<vmem>>, vector<1x64xf32>
    %c0_9 = arith.constant 0 : index
    %c0_10 = arith.constant 0 : index
    %5 = vector.load %arg5[%c0_9, %c0_10] : memref<1x64xf32, #tpu.memory_space<vmem>>, vector<1x64xf32>
    %c0_11 = arith.constant 0 : index
    %c0_12 = arith.constant 0 : index
    %6 = vector.load %arg6[%c0_11, %c0_12] : memref<64x32xf32, #tpu.memory_space<vmem>>, vector<64x32xf32>
    %c0_13 = arith.constant 0 : index
    %c0_14 = arith.constant 0 : index
    %7 = vector.load %arg7[%c0_13, %c0_14] : memref<1x32xf32, #tpu.memory_space<vmem>>, vector<1x32xf32>
    %c0_15 = arith.constant 0 : index
    %c0_16 = arith.constant 0 : index
    %8 = vector.load %arg8[%c0_15, %c0_16] : memref<32x32xf32, #tpu.memory_space<vmem>>, vector<32x32xf32>
    %c0_17 = arith.constant 0 : index
    %c0_18 = arith.constant 0 : index
    %9 = vector.load %arg9[%c0_17, %c0_18] : memref<1x32xf32, #tpu.memory_space<vmem>>, vector<1x32xf32>
    %c0_19 = arith.constant 0 : index
    %c0_20 = arith.constant 0 : index
    %10 = vector.load %arg10[%c0_19, %c0_20] : memref<64x64xf32, #tpu.memory_space<vmem>>, vector<64x64xf32>
    %c0_21 = arith.constant 0 : index
    %c0_22 = arith.constant 0 : index
    %11 = vector.load %arg11[%c0_21, %c0_22] : memref<64x64xf32, #tpu.memory_space<vmem>>, vector<64x64xf32>
    %c0_23 = arith.constant 0 : index
    %c0_24 = arith.constant 0 : index
    %12 = vector.load %arg12[%c0_23, %c0_24] : memref<64x64xf32, #tpu.memory_space<vmem>>, vector<64x64xf32>
    %c0_25 = arith.constant 0 : index
    %c0_26 = arith.constant 0 : index
    %13 = vector.load %arg13[%c0_25, %c0_26] : memref<64x64xf32, #tpu.memory_space<vmem>>, vector<64x64xf32>
    %c0_27 = arith.constant 0 : index
    %c0_28 = arith.constant 0 : index
    %14 = vector.load %arg14[%c0_27, %c0_28] : memref<1x1xf32, #tpu.memory_space<vmem>>, vector<1x1xf32>
    %cst = arith.constant dense<0.000000e+00> : vector<64x64xf32>
    %15 = tpu.matmul %0, %2, %cst {dimension_numbers = #tpu.dot_dimension_numbers<[1], [0], [0], [1], [0, 0, 1, 1], [], []>} : vector<64x3xf32>, vector<3x64xf32>, vector<64x64xf32> -> vector<64x64xf32>
    %16 = vector.broadcast %3 : vector<1x64xf32> to vector<64x64xf32>
    %17 = arith.addf %15, %16 : vector<64x64xf32>
    %cst_29 = arith.constant dense<0.000000e+00> : vector<64xf32>
    %18 = vector.multi_reduction <add>, %17, %cst_29 [0] : vector<64x64xf32> to vector<64xf32>
    %19 = vector.shape_cast %18 : vector<64xf32> to vector<1x64xf32>
    %20 = vector.broadcast %1 : vector<64x1xf32> to vector<64x64xf32>
    %21 = arith.mulf %17, %20 : vector<64x64xf32>
    %cst_30 = arith.constant dense<0.000000e+00> : vector<64xf32>
    %22 = vector.multi_reduction <add>, %21, %cst_30 [0] : vector<64x64xf32> to vector<64xf32>
    %23 = vector.shape_cast %22 : vector<64xf32> to vector<1x64xf32>
    %cst_31 = arith.constant 3.125000e-02 : f32
    %24 = vector.broadcast %cst_31 : f32 to vector<1x64xf32>
    %25 = arith.mulf %23, %24 : vector<1x64xf32>
    %26 = arith.subf %19, %23 : vector<1x64xf32>
    %cst_32 = arith.constant 3.125000e-02 : f32
    %27 = vector.broadcast %cst_32 : f32 to vector<1x64xf32>
    %28 = arith.mulf %26, %27 : vector<1x64xf32>
    %29 = arith.subf %25, %28 : vector<1x64xf32>
    %30 = vector.broadcast %1 : vector<64x1xf32> to vector<64x64xf32>
    %31 = vector.broadcast %29 : vector<1x64xf32> to vector<64x64xf32>
    %32 = arith.mulf %30, %31 : vector<64x64xf32>
    %33 = vector.broadcast %28 : vector<1x64xf32> to vector<64x64xf32>
    %34 = arith.addf %33, %32 : vector<64x64xf32>
    %35 = arith.subf %17, %34 : vector<64x64xf32>
    %36 = arith.mulf %35, %35 : vector<64x64xf32>
    %cst_33 = arith.constant dense<0.000000e+00> : vector<64xf32>
    %37 = vector.multi_reduction <add>, %36, %cst_33 [0] : vector<64x64xf32> to vector<64xf32>
    %38 = vector.shape_cast %37 : vector<64xf32> to vector<1x64xf32>
    %39 = vector.broadcast %1 : vector<64x1xf32> to vector<64x64xf32>
    %40 = arith.mulf %36, %39 : vector<64x64xf32>
    %cst_34 = arith.constant dense<0.000000e+00> : vector<64xf32>
    %41 = vector.multi_reduction <add>, %40, %cst_34 [0] : vector<64x64xf32> to vector<64xf32>
    %42 = vector.shape_cast %41 : vector<64xf32> to vector<1x64xf32>
    %cst_35 = arith.constant 3.125000e-02 : f32
    %43 = vector.broadcast %cst_35 : f32 to vector<1x64xf32>
    %44 = arith.mulf %42, %43 : vector<1x64xf32>
    %45 = arith.subf %38, %42 : vector<1x64xf32>
    %cst_36 = arith.constant 3.125000e-02 : f32
    %46 = vector.broadcast %cst_36 : f32 to vector<1x64xf32>
    %47 = arith.mulf %45, %46 : vector<1x64xf32>
    %48 = arith.subf %44, %47 : vector<1x64xf32>
    %49 = vector.broadcast %1 : vector<64x1xf32> to vector<64x64xf32>
    %50 = vector.broadcast %48 : vector<1x64xf32> to vector<64x64xf32>
    %51 = arith.mulf %49, %50 : vector<64x64xf32>
    %52 = vector.broadcast %47 : vector<1x64xf32> to vector<64x64xf32>
    %53 = arith.addf %52, %51 : vector<64x64xf32>
    %cst_37 = arith.constant 9.99999974E-6 : f32
    %54 = vector.broadcast %cst_37 : f32 to vector<64x64xf32>
    %55 = arith.addf %53, %54 : vector<64x64xf32>
    %56 = math.rsqrt %55 : vector<64x64xf32>
    %57 = arith.mulf %35, %56 : vector<64x64xf32>
    %58 = vector.broadcast %4 : vector<1x64xf32> to vector<64x64xf32>
    %59 = arith.mulf %57, %58 : vector<64x64xf32>
    %60 = vector.broadcast %5 : vector<1x64xf32> to vector<64x64xf32>
    %61 = arith.addf %59, %60 : vector<64x64xf32>
    %cst_38 = arith.constant 0.000000e+00 : f32
    %62 = vector.broadcast %cst_38 : f32 to vector<64x64xf32>
    %63 = arith.maximumf %61, %62 : vector<64x64xf32>
    %cst_39 = arith.constant dense<0.000000e+00> : vector<64x32xf32>
    %64 = tpu.matmul %63, %6, %cst_39 {dimension_numbers = #tpu.dot_dimension_numbers<[1], [0], [0], [1], [0, 0, 1, 1], [], []>} : vector<64x64xf32>, vector<64x32xf32>, vector<64x32xf32> -> vector<64x32xf32>
    %65 = vector.broadcast %7 : vector<1x32xf32> to vector<64x32xf32>
    %66 = arith.addf %64, %65 : vector<64x32xf32>
    %67 = arith.mulf %66, %66 : vector<64x32xf32>
    %cst_40 = arith.constant dense<0.000000e+00> : vector<64xf32>
    %68 = vector.multi_reduction <add>, %67, %cst_40 [1] : vector<64x32xf32> to vector<64xf32>
    %69 = vector.shape_cast %68 : vector<64xf32> to vector<64x1xf32>
    %cst_41 = arith.constant 1.000000e-16 : f32
    %70 = vector.broadcast %cst_41 : f32 to vector<64x1xf32>
    %71 = arith.maximumf %69, %70 : vector<64x1xf32>
    %72 = math.rsqrt %71 : vector<64x1xf32>
    %73 = vector.broadcast %72 : vector<64x1xf32> to vector<64x32xf32>
    %74 = arith.mulf %66, %73 : vector<64x32xf32>
    %cst_42 = arith.constant dense<0.000000e+00> : vector<64x64xf32>
    %75 = tpu.matmul %74, %74, %cst_42 {dimension_numbers = #tpu.dot_dimension_numbers<[1], [1], [0], [0], [0, 0, 1, 0], [], []>} : vector<64x32xf32>, vector<64x32xf32>, vector<64x64xf32> -> vector<64x64xf32>
    %cst_43 = arith.constant dense<0.000000e+00> : vector<64x32xf32>
    %76 = tpu.matmul %66, %8, %cst_43 {dimension_numbers = #tpu.dot_dimension_numbers<[1], [0], [0], [1], [0, 0, 1, 1], [], []>} : vector<64x32xf32>, vector<32x32xf32>, vector<64x32xf32> -> vector<64x32xf32>
    %77 = vector.broadcast %9 : vector<1x32xf32> to vector<64x32xf32>
    %78 = arith.addf %76, %77 : vector<64x32xf32>
    %cst_44 = arith.constant 0.000000e+00 : f32
    %79 = vector.broadcast %cst_44 : f32 to vector<64x64xf32>
    %80 = arith.maximumf %75, %79 : vector<64x64xf32>
    %81 = arith.mulf %80, %80 : vector<64x64xf32>
    %82 = arith.mulf %81, %10 : vector<64x64xf32>
    %cst_45 = arith.constant dense<0.000000e+00> : vector<64x32xf32>
    %83 = tpu.matmul %82, %78, %cst_45 {dimension_numbers = #tpu.dot_dimension_numbers<[1], [0], [0], [1], [0, 0, 1, 1], [], []>} : vector<64x64xf32>, vector<64x32xf32>, vector<64x32xf32> -> vector<64x32xf32>
    %84 = arith.mulf %83, %83 : vector<64x32xf32>
    %cst_46 = arith.constant dense<0.000000e+00> : vector<64xf32>
    %85 = vector.multi_reduction <add>, %84, %cst_46 [1] : vector<64x32xf32> to vector<64xf32>
    %86 = vector.shape_cast %85 : vector<64xf32> to vector<64x1xf32>
    %cst_47 = arith.constant 1.000000e-16 : f32
    %87 = vector.broadcast %cst_47 : f32 to vector<64x1xf32>
    %88 = arith.maximumf %86, %87 : vector<64x1xf32>
    %89 = math.rsqrt %88 : vector<64x1xf32>
    %90 = vector.broadcast %89 : vector<64x1xf32> to vector<64x32xf32>
    %91 = arith.mulf %83, %90 : vector<64x32xf32>
    %cst_48 = arith.constant dense<0.000000e+00> : vector<64x64xf32>
    %92 = tpu.matmul %91, %74, %cst_48 {dimension_numbers = #tpu.dot_dimension_numbers<[1], [1], [0], [0], [0, 0, 1, 0], [], []>} : vector<64x32xf32>, vector<64x32xf32>, vector<64x64xf32> -> vector<64x64xf32>
    %cst_49 = arith.constant 3.33333325 : f32
    %93 = vector.broadcast %cst_49 : f32 to vector<64x64xf32>
    %94 = arith.mulf %75, %93 : vector<64x64xf32>
    %95 = math.exp %94 : vector<64x64xf32>
    %96 = arith.mulf %95, %11 : vector<64x64xf32>
    %cst_50 = arith.constant dense<0.000000e+00> : vector<64xf32>
    %97 = vector.multi_reduction <add>, %96, %cst_50 [1] : vector<64x64xf32> to vector<64xf32>
    %98 = vector.shape_cast %97 : vector<64xf32> to vector<64x1xf32>
    %cst_51 = arith.constant dense<0.000000e+00> : vector<1xf32>
    %99 = vector.multi_reduction <add>, %98, %cst_51 [0] : vector<64x1xf32> to vector<1xf32>
    %100 = vector.shape_cast %99 : vector<1xf32> to vector<1x1xf32>
    %101 = arith.mulf %95, %12 : vector<64x64xf32>
    %cst_52 = arith.constant dense<0.000000e+00> : vector<64xf32>
    %102 = vector.multi_reduction <add>, %101, %cst_52 [1] : vector<64x64xf32> to vector<64xf32>
    %103 = vector.shape_cast %102 : vector<64xf32> to vector<64x1xf32>
    %cst_53 = arith.constant dense<0.000000e+00> : vector<1xf32>
    %104 = vector.multi_reduction <add>, %103, %cst_53 [0] : vector<64x1xf32> to vector<1xf32>
    %105 = vector.shape_cast %104 : vector<1xf32> to vector<1x1xf32>
    %106 = arith.mulf %92, %13 : vector<64x64xf32>
    %cst_54 = arith.constant dense<0.000000e+00> : vector<64xf32>
    %107 = vector.multi_reduction <add>, %106, %cst_54 [1] : vector<64x64xf32> to vector<64xf32>
    %108 = vector.shape_cast %107 : vector<64xf32> to vector<64x1xf32>
    %cst_55 = arith.constant dense<0.000000e+00> : vector<1xf32>
    %109 = vector.multi_reduction <add>, %108, %cst_55 [0] : vector<64x1xf32> to vector<1xf32>
    %110 = vector.shape_cast %109 : vector<1xf32> to vector<1x1xf32>
    %111 = arith.divf %100, %105 : vector<1x1xf32>
    %112 = math.log %111 : vector<1x1xf32>
    %cst_56 = arith.constant 0.000000e+00 : f32
    %113 = vector.broadcast %cst_56 : f32 to vector<1x1xf32>
    %114 = arith.subf %113, %112 : vector<1x1xf32>
    %cst_57 = arith.constant 0.000000e+00 : f32
    %115 = vector.broadcast %cst_57 : f32 to vector<1x1xf32>
    %116 = arith.subf %115, %110 : vector<1x1xf32>
    %117 = arith.mulf %116, %14 : vector<1x1xf32>
    %cst_58 = arith.constant 1.000000e+00 : f32
    %118 = vector.broadcast %cst_58 : f32 to vector<1x1xf32>
    %119 = arith.mulf %114, %118 : vector<1x1xf32>
    %120 = arith.mulf %119, %117 : vector<1x1xf32>
    %121 = vector.shape_cast %120 : vector<1x1xf32> to vector<1x1xf32>
    %122 = vector.broadcast %121 : vector<1x1xf32> to vector<1x128xf32>
    %c0_59 = arith.constant 0 : index
    %c0_60 = arith.constant 0 : index
    %123 = vector.load %arg15[%c0_59, %c0_60] : memref<1x128xf32, #tpu.memory_space<vmem>>, vector<1x128xf32>
    tpu.vector_store %arg15[%c0_59, %c0_60], %122 {strides = array<i32>} : memref<1x128xf32, #tpu.memory_space<vmem>>, vector<1x128xf32>,
    return
  }
}

</mosaic_0001>

<llo_original>
// kernel: sub.15
$region0: #{sub.15}
  %s0 = inlined_call_operand.vmem [shape: f32[1,4,4,2], index: 0, kind: input, shape index: {}]
  %s1 = inlined_call_operand.vmem [shape: f32[16,2], index: 1, kind: output, shape index: {}]
  $region1: #{sub.15} parent=0
    #allocation0 [shape = 'u8[4096]{0}', space=vmem, size = 0x1000, scoped, tag = 'scoped mem for output reshape']
    #allocation1 [shape = 'u8[8192]{0}', space=vmem, size = 0x2000, scoped, tag = 'scoped mem for input reshape']
    %s3 = sshll.u32 1, 4
    %s4 = ssub.s32 %s3, 1
    %s5 = scalar_lea.vmem %s0, 4
    %v6 = vld [vmem:[%s5] sm:%s4]
    %s7 = scalar_lea.vmem [#allocation1], 8
    %8 = vst [vmem:[%s7] sm:%s4] %v6
    %v9 = vld [vmem:[%s0] sm:%s4]
    %10 = vst [vmem:[#allocation1] sm:%s4] %v9
    %s11 = smov 3
    %v12 = vld [vmem:[#allocation1] ss:$8 sm:%s11]
    %vm13 = vcmask 31744
    %14 = vst.msk [vmem:[#allocation0] sm:$0x3] %vm13, %v12
    %s15 = scalar_lea.vmem [#allocation1], 3
    %s16 = smov 3
    %v17 = vld [vmem:[%s15] ss:$8 sm:%s16]
    %18 = vrot.lane.b32.xlu0 %v17, 12
    %v19 = vpop.permute.xlu0 %18
    %vm20 = vcmask 130144
    %21 = vst.msk [vmem:[#allocation0] sm:$0x3] %vm20, %v19
    %s22 = scalar_lea.vmem [#allocation1], 2
    %s23 = smov 3
    %v24 = vld [vmem:[%s22] ss:$8 sm:%s23]
    %25 = vrot.lane.b32.xlu0 %v24, 8
    %v26 = vpop.permute.xlu0 %25
    %vm27 = vcmask 97344
    %28 = vst.msk [vmem:[#allocation0] sm:$0x3] %vm27, %v26
    %s29 = scalar_lea.vmem [#allocation1], 1
    %s30 = smov 3
    %v31 = vld [vmem:[%s29] ss:$8 sm:%s30]
    %32 = vrot.lane.b32.xlu0 %v31, 4
    %v33 = vpop.permute.xlu0 %32
    %vm34 = vcmask 64544
    %35 = vst.msk [vmem:[#allocation0] sm:$0x3] %vm34, %v33
    %s37 = sshll.u32 1, 2
    %s38 = ssub.s32 %s37, 1
    %v40 = vld [vmem:[#allocation0] sm:%s38]
    %s41 = sshll.u32 1, 2
    %s42 = ssub.s32 %s41, 1
    %43 = vst [vmem:[%s1] sm:%s42] %v40

// kernel: pixel_cl_forward.1
$region0: #{pixel_cl_forward.1}
  #allocation0 [shape = 'u32[]', space=smem, size = 0x4, offset = 0x4, fixed_abs, tag = 'smem constant byte address 0x4 - core index']
  #allocation1 [shape = 'u32[144,128]{1,0:T(1,128)}', space=vmem, size = 0x12000, scoped, tag = 'internal scratch']
  #allocation2 [shape = 'f32[1,1]{1,0:T(1,128)S(1)}', space=vmem, size = 0x200, scoped, tag = 'scoped memory for pixel_cl_forward.1']
  %s0 = inlined_call_operand.vmem [shape: f32[64,3], index: 0, kind: input, shape index: {}]
  %s1 = inlined_call_operand.vmem [shape: f32[64,1], index: 1, kind: input, shape index: {}]
  %s2 = inlined_call_operand.vmem [shape: f32[3,64], index: 2, kind: input, shape index: {}]
  %s3 = inlined_call_operand.vmem [shape: f32[1,64], index: 3, kind: input, shape index: {}]
  %s4 = inlined_call_operand.vmem [shape: f32[1,64], index: 4, kind: input, shape index: {}]
  %s5 = inlined_call_operand.vmem [shape: f32[1,64], index: 5, kind: input, shape index: {}]
  %s6 = inlined_call_operand.vmem [shape: f32[64,32], index: 6, kind: input, shape index: {}]
  %s7 = inlined_call_operand.vmem [shape: f32[1,32], index: 7, kind: input, shape index: {}]
  %s8 = inlined_call_operand.vmem [shape: f32[32,32], index: 8, kind: input, shape index: {}]
  %s9 = inlined_call_operand.vmem [shape: f32[1,32], index: 9, kind: input, shape index: {}]
  %s10 = inlined_call_operand.vmem [shape: f32[64,64], index: 10, kind: input, shape index: {}]
  %s11 = inlined_call_operand.vmem [shape: f32[64,64], index: 11, kind: input, shape index: {}]
  %s12 = inlined_call_operand.vmem [shape: f32[64,64], index: 12, kind: input, shape index: {}]
  %s13 = inlined_call_operand.vmem [shape: f32[64,64], index: 13, kind: input, shape index: {}]
  %s14 = inlined_call_operand.<no memory space> [shape: f32[1,1], index: 14, kind: input, shape index: {}]
  %s15 = inlined_call_operand.hbm [shape: f32[1,128], index: 15, kind: output, shape index: {}]
  %s16 = sld [smem:[#allocation0]]
  $region70: #{pixel_cl_forward.1} parent=0
    _
  %s18 = ssub.s32 1, %s16
  %s19 = scalar_select 0, %s18, %s16
  %v20 = vstv %s14
  %21 = vst [vmem:[#allocation2] sm:$0x1] %v20
  $region1: #{pixel_cl_forward.1} parent=0
    #allocation3 [shape = 'u8[512]{0}', space=vmem, size = 0x400, scoped, tag = 'output window, operand 0, single buffered']
    #allocation4 [shape = 's32[1]{0}', space=sflag, size = 0x4, scoped, tag = 'scoped memory for pixel_cl_forward.1']
    %22 = vsyncpa [#allocation4], 0
    // Predicated region
    $region2: #{pixel_cl_forward.1} parent=1 // pred_check
      _
    $region3: #{pixel_cl_forward.1} parent=1 // pred_check_branch
      %24 = sbr.rel (0) target = $region5
    $region4: #{pixel_cl_forward.1} parent=1 // pred_region
      _
    $region5: #{pixel_cl_forward.1} parent=1 // pred_fallthru
      _
    // Predicated region
    $region6: #{pixel_cl_forward.1} parent=1 // pred_check
      _
    $region7: #{pixel_cl_forward.1} parent=1 // pred_check_branch
      %26 = sbr.rel (0) target = $region9
    $region8: #{pixel_cl_forward.1} parent=1 // pred_region
      _
    $region9: #{pixel_cl_forward.1} parent=1 // pred_fallthru
      _
    // Predicated region
    $region10: #{pixel_cl_forward.1} parent=1 // pred_check
      _
    $region11: #{pixel_cl_forward.1} parent=1 // pred_check_branch
      %28 = sbr.rel (0) target = $region13
    $region12: #{pixel_cl_forward.1} parent=1 // pred_region
      _
    $region13: #{pixel_cl_forward.1} parent=1 // pred_fallthru
      _
    // Predicated region
    $region14: #{pixel_cl_forward.1} parent=1 // pred_check
      _
    $region15: #{pixel_cl_forward.1} parent=1 // pred_check_branch
      %30 = sbr.rel (0) target = $region17
    $region16: #{pixel_cl_forward.1} parent=1 // pred_region
      _
    $region17: #{pixel_cl_forward.1} parent=1 // pred_fallthru
      _
    // Predicated region
    $region18: #{pixel_cl_forward.1} parent=1 // pred_check
      _
    $region19: #{pixel_cl_forward.1} parent=1 // pred_check_branch
      %32 = sbr.rel (0) target = $region21
    $region20: #{pixel_cl_forward.1} parent=1 // pred_region
      _
    $region21: #{pixel_cl_forward.1} parent=1 // pred_fallthru
      _
    // Predicated region
    $region22: #{pixel_cl_forward.1} parent=1 // pred_check
      _
    $region23: #{pixel_cl_forward.1} parent=1 // pred_check_branch
      %34 = sbr.rel (0) target = $region25
    $region24: #{pixel_cl_forward.1} parent=1 // pred_region
      _
    $region25: #{pixel_cl_forward.1} parent=1 // pred_fallthru
      _
    // Predicated region
    $region26: #{pixel_cl_forward.1} parent=1 // pred_check
      _
    $region27: #{pixel_cl_forward.1} parent=1 // pred_check_branch
      %36 = sbr.rel (0) target = $region29
    $region28: #{pixel_cl_forward.1} parent=1 // pred_region
      _
    $region29: #{pixel_cl_forward.1} parent=1 // pred_fallthru
      _
    // Predicated region
    $region30: #{pixel_cl_forward.1} parent=1 // pred_check
      _
    $region31: #{pixel_cl_forward.1} parent=1 // pred_check_branch
      %38 = sbr.rel (0) target = $region33
    $region32: #{pixel_cl_forward.1} parent=1 // pred_region
      _
    $region33: #{pixel_cl_forward.1} parent=1 // pred_fallthru
      _
    // Predicated region
    $region34: #{pixel_cl_forward.1} parent=1 // pred_check
      _
    $region35: #{pixel_cl_forward.1} parent=1 // pred_check_branch
      %40 = sbr.rel (0) target = $region37
    $region36: #{pixel_cl_forward.1} parent=1 // pred_region
      _
    $region37: #{pixel_cl_forward.1} parent=1 // pred_fallthru
      _
    // Predicated region
    $region38: #{pixel_cl_forward.1} parent=1 // pred_check
      _
    $region39: #{pixel_cl_forward.1} parent=1 // pred_check_branch
      %42 = sbr.rel (0) target = $region41
    $region40: #{pixel_cl_forward.1} parent=1 // pred_region
      _
    $region41: #{pixel_cl_forward.1} parent=1 // pred_fallthru
      _
    // Predicated region
    $region42: #{pixel_cl_forward.1} parent=1 // pred_check
      _
    $region43: #{pixel_cl_forward.1} parent=1 // pred_check_branch
      %44 = sbr.rel (0) target = $region45
    $region44: #{pixel_cl_forward.1} parent=1 // pred_region
      _
    $region45: #{pixel_cl_forward.1} parent=1 // pred_fallthru
      _
    // Predicated region
    $region46: #{pixel_cl_forward.1} parent=1 // pred_check
      _
    $region47: #{pixel_cl_forward.1} parent=1 // pred_check_branch
      %46 = sbr.rel (0) target = $region49
    $region48: #{pixel_cl_forward.1} parent=1 // pred_region
      _
    $region49: #{pixel_cl_forward.1} parent=1 // pred_fallthru
      _
    // Predicated region
    $region50: #{pixel_cl_forward.1} parent=1 // pred_check
      _
    $region51: #{pixel_cl_forward.1} parent=1 // pred_check_branch
      %48 = sbr.rel (0) target = $region53
    $region52: #{pixel_cl_forward.1} parent=1 // pred_region
      _
    $region53: #{pixel_cl_forward.1} parent=1 // pred_fallthru
      _
    // Predicated region
    $region54: #{pixel_cl_forward.1} parent=1 // pred_check
      _
    $region55: #{pixel_cl_forward.1} parent=1 // pred_check_branch
      %50 = sbr.rel (0) target = $region57
    $region56: #{pixel_cl_forward.1} parent=1 // pred_region
      _
    $region57: #{pixel_cl_forward.1} parent=1 // pred_fallthru
      _
    // Predicated region
    $region58: #{pixel_cl_forward.1} parent=1 // pred_check
      _
    $region59: #{pixel_cl_forward.1} parent=1 // pred_check_branch
      %52 = sbr.rel (0) target = $region61
    $region60: #{pixel_cl_forward.1} parent=1 // pred_region
      _
    $region61: #{pixel_cl_forward.1} parent=1 // pred_fallthru
      _
    %v53 = vld [vmem:[%s0] sm:$0xff]
    %v54 = vld [vmem:[%s0 + $0x8] sm:$0xff]
    %v55 = vld [vmem:[%s0 + $0x10] sm:$0xff]
    %v56 = vld [vmem:[%s0 + $0x18] sm:$0xff]
    %v57 = vld [vmem:[%s0 + $0x20] sm:$0xff]
    %v58 = vld [vmem:[%s0 + $0x28] sm:$0xff]
    %v59 = vld [vmem:[%s0 + $0x30] sm:$0xff]
    %v60 = vld [vmem:[%s0 + $0x38] sm:$0xff]
    %v61 = vld [vmem:[%s1] sm:$0xff]
    %v62 = vld [vmem:[%s1 + $0x8] sm:$0xff]
    %v63 = vld [vmem:[%s1 + $0x10] sm:$0xff]
    %v64 = vld [vmem:[%s1 + $0x18] sm:$0xff]
    %v65 = vld [vmem:[%s1 + $0x20] sm:$0xff]
    %v66 = vld [vmem:[%s1 + $0x28] sm:$0xff]
    %v67 = vld [vmem:[%s1 + $0x30] sm:$0xff]
    %v68 = vld [vmem:[%s1 + $0x38] sm:$0xff]
    %v69 = vld [vmem:[%s2] sm:$0x7]
    %v70 = vld [vmem:[%s3] sm:$0x1]
    %v71 = vld [vmem:[%s4] sm:$0x1]
    %v72 = vld [vmem:[%s5] sm:$0x1]
    %v73 = vld [vmem:[%s6] sm:$0xff]
    %v74 = vld [vmem:[%s6 + $0x8] sm:$0xff]
    %v75 = vld [vmem:[%s6 + $0x10] sm:$0xff]
    %v76 = vld [vmem:[%s6 + $0x18] sm:$0xff]
    %v77 = vld [vmem:[%s6 + $0x20] sm:$0xff]
    %v78 = vld [vmem:[%s6 + $0x28] sm:$0xff]
    %v79 = vld [vmem:[%s6 + $0x30] sm:$0xff]
    %v80 = vld [vmem:[%s6 + $0x38] sm:$0xff]
    %v81 = vld [vmem:[%s7] sm:$0x1]
    %v82 = vld [vmem:[%s8] sm:$0xff]
    %v83 = vld [vmem:[%s8 + $0x8] sm:$0xff]
    %v84 = vld [vmem:[%s8 + $0x10] sm:$0xff]
    %v85 = vld [vmem:[%s8 + $0x18] sm:$0xff]
    %v86 = vld [vmem:[%s9] sm:$0x1]
    %v87 = vld [vmem:[%s10] sm:$0xff]
    %v88 = vld [vmem:[%s10 + $0x8] sm:$0xff]
    %v89 = vld [vmem:[%s10 + $0x10] sm:$0xff]
    %v90 = vld [vmem:[%s10 + $0x18] sm:$0xff]
    %v91 = vld [vmem:[%s10 + $0x20] sm:$0xff]
    %v92 = vld [vmem:[%s10 + $0x28] sm:$0xff]
    %v93 = vld [vmem:[%s10 + $0x30] sm:$0xff]
    %v94 = vld [vmem:[%s10 + $0x38] sm:$0xff]
    %v95 = vld [vmem:[%s11] sm:$0xff]
    %v96 = vld [vmem:[%s11 + $0x8] sm:$0xff]
    %v97 = vld [vmem:[%s11 + $0x10] sm:$0xff]
    %v98 = vld [vmem:[%s11 + $0x18] sm:$0xff]
    %v99 = vld [vmem:[%s11 + $0x20] sm:$0xff]
    %v100 = vld [vmem:[%s11 + $0x28] sm:$0xff]
    %v101 = vld [vmem:[%s11 + $0x30] sm:$0xff]
    %v102 = vld [vmem:[%s11 + $0x38] sm:$0xff]
    %v103 = vld [vmem:[%s12] sm:$0xff]
    %v104 = vld [vmem:[%s12 + $0x8] sm:$0xff]
    %v105 = vld [vmem:[%s12 + $0x10] sm:$0xff]
    %v106 = vld [vmem:[%s12 + $0x18] sm:$0xff]
    %v107 = vld [vmem:[%s12 + $0x20] sm:$0xff]
    %v108 = vld [vmem:[%s12 + $0x28] sm:$0xff]
    %v109 = vld [vmem:[%s12 + $0x30] sm:$0xff]
    %v110 = vld [vmem:[%s12 + $0x38] sm:$0xff]
    %v111 = vld [vmem:[%s13] sm:$0xff]
    %v112 = vld [vmem:[%s13 + $0x8] sm:$0xff]
    %v113 = vld [vmem:[%s13 + $0x10] sm:$0xff]
    %v114 = vld [vmem:[%s13 + $0x18] sm:$0xff]
    %v115 = vld [vmem:[%s13 + $0x20] sm:$0xff]
    %v116 = vld [vmem:[%s13 + $0x28] sm:$0xff]
    %v117 = vld [vmem:[%s13 + $0x30] sm:$0xff]
    %v118 = vld [vmem:[%s13 + $0x38] sm:$0xff]
    %v119 = vld [vmem:[#allocation2] sm:$0x1]
    %v121 = vlaneseq
    %v122 = vshrl.u32 %v121, 7
    %v123 = vsub.s32 0, %v122
    %v124 = vrot.slane %v70, %v123
    %vm126 = vcmask 23552
    %v128 = vsel %vm126, %v53, 0
    %v131 = vsel %vm126, %v54, 0
    %v134 = vsel %vm126, %v55, 0
    %v137 = vsel %vm126, %v56, 0
    %v140 = vsel %vm126, %v57, 0
    %v143 = vsel %vm126, %v58, 0
    %v146 = vsel %vm126, %v59, 0
    %v149 = vsel %vm126, %v60, 0
    %vm151 = vcmask 1042432
    %v153 = vsel %vm151, %v69, 0
    %155 = vmatprep.subr.mxu0 0.0
    %156 = vmatpush1.msra.mxu0 0.0
    %157 = vmatprep.subr.mxu0 0.0
    %158 = vmatpush1.msra.mxu0 0.0
    %159 = vmatprep.subr.mxu0 0.0
    %160 = vmatpush1.msra.mxu0 0.0
    %161 = vmatprep.subr.mxu0 0.0
    %162 = vmatpush1.msra.mxu0 0.0
    %163 = vmatprep.subr.mxu0 0.0
    %164 = vmatpush1.msra.mxu0 0.0
    %165 = vmatprep.subr.mxu0 0.0
    %166 = vmatpush1.msra.mxu0 0.0
    %167 = vmatprep.subr.mxu0 0.0
    %168 = vmatpush1.msra.mxu0 0.0
    %169 = vmatprep.subr.mxu0 0.0
    %170 = vmatpush1.msra.mxu0 0.0
    %171 = vmatprep.subr.mxu0 0.0
    %172 = vmatpush1.msra.mxu0 0.0
    %173 = vmatprep.subr.mxu0 0.0
    %174 = vmatpush1.msra.mxu0 0.0
    %175 = vmatprep.subr.mxu0 0.0
    %176 = vmatpush1.msra.mxu0 0.0
    %177 = vmatprep.subr.mxu0 0.0
    %178 = vmatpush1.msra.mxu0 0.0
    %179 = vmatprep.subr.mxu0 0.0
    %180 = vmatpush1.msra.mxu0 0.0
    %181 = vmatprep.subr.mxu0 0.0
    %182 = vmatpush1.msra.mxu0 0.0
    %183 = vmatprep.subr.mxu0 0.0
    %184 = vmatpush1.msra.mxu0 0.0
    %185 = vmatprep.subr.mxu0 0.0
    %186 = vmatpush1.msra.mxu0 %v153
    %187 = vmatprep.subr.mxu0 0.0
    %188 = vmatpush2.msra.mxu0 0.0
    %189 = vmatprep.subr.mxu0 0.0
    %190 = vmatpush2.msra.mxu0 0.0
    %191 = vmatprep.subr.mxu0 0.0
    %192 = vmatpush2.msra.mxu0 0.0
    %193 = vmatprep.subr.mxu0 0.0
    %194 = vmatpush2.msra.mxu0 0.0
    %195 = vmatprep.subr.mxu0 0.0
    %196 = vmatpush2.msra.mxu0 0.0
    %197 = vmatprep.subr.mxu0 0.0
    %198 = vmatpush2.msra.mxu0 0.0
    %199 = vmatprep.subr.mxu0 0.0
    %200 = vmatpush2.msra.mxu0 0.0
    %201 = vmatprep.subr.mxu0 0.0
    %202 = vmatpush2.msra.mxu0 0.0
    %203 = vmatprep.subr.mxu0 0.0
    %204 = vmatpush2.msra.mxu0 0.0
    %205 = vmatprep.subr.mxu0 0.0
    %206 = vmatpush2.msra.mxu0 0.0
    %207 = vmatprep.subr.mxu0 0.0
    %208 = vmatpush2.msra.mxu0 0.0
    %209 = vmatprep.subr.mxu0 0.0
    %210 = vmatpush2.msra.mxu0 0.0
    %211 = vmatprep.subr.mxu0 0.0
    %212 = vmatpush2.msra.mxu0 0.0
    %213 = vmatprep.subr.mxu0 0.0
    %214 = vmatpush2.msra.mxu0 0.0
    %215 = vmatprep.subr.mxu0 0.0
    %216 = vmatpush2.msra.mxu0 0.0
    %217 = vmatprep.subr.mxu0 0.0
    %218 = vmatpush2.msra.mxu0 0.0
    %219 = vmatprep.mubr.f32.mxu0 0.0
    %220 = vmatmul.mubr.f32.gmra.mxu0 %v128
    %v221 = vpop.f32.mrf.mxu0
    %v222 = vadd.f32 %v124, %v221
    %v223 = vpop.f32.mrf.mxu0
    %224 = vmatprep.mubr.f32.mxu0 0.0
    %225 = vmatmul.mubr.f32.gmra.mxu0 %v131
    %v226 = vpop.f32.mrf.mxu0
    %v227 = vadd.f32 %v124, %v226
    %v228 = vpop.f32.mrf.mxu0
    %229 = vmatprep.mubr.f32.mxu0 0.0
    %230 = vmatmul.mubr.f32.gmra.mxu0 %v134
    %v231 = vpop.f32.mrf.mxu0
    %v232 = vadd.f32 %v124, %v231
    %v233 = vpop.f32.mrf.mxu0
    %234 = vmatprep.mubr.f32.mxu0 0.0
    %235 = vmatmul.mubr.f32.gmra.mxu0 %v137
    %v236 = vpop.f32.mrf.mxu0
    %v237 = vadd.f32 %v124, %v236
    %v238 = vpop.f32.mrf.mxu0
    %239 = vmatprep.mubr.f32.mxu0 0.0
    %240 = vmatmul.mubr.f32.gmra.mxu0 %v140
    %v241 = vpop.f32.mrf.mxu0
    %v242 = vadd.f32 %v124, %v241
    %v243 = vpop.f32.mrf.mxu0
    %244 = vmatprep.mubr.f32.mxu0 0.0
    %245 = vmatmul.mubr.f32.gmra.mxu0 %v143
    %v246 = vpop.f32.mrf.mxu0
    %v247 = vadd.f32 %v124, %v246
    %v248 = vpop.f32.mrf.mxu0
    %249 = vmatprep.mubr.f32.mxu0 0.0
    %250 = vmatmul.mubr.f32.gmra.mxu0 %v146
    %v251 = vpop.f32.mrf.mxu0
    %v252 = vadd.f32 %v124, %v251
    %v253 = vpop.f32.mrf.mxu0
    %254 = vmatprep.mubr.f32.mxu0 0.0
    %255 = vmatmul.mubr.f32.gmra.mxu0 %v149
    %v256 = vpop.f32.mrf.mxu0
    %v257 = vadd.f32 %v124, %v256
    %v258 = vpop.f32.mrf.mxu0
    %259 = vdwg.mxu0
    %vm260 = vcmask 523264
    %v261 = vsel %vm260, %v222, 0.0
    %v262 = vsel %vm260, %v227, 0.0
    %v263 = vadd.f32 %v261, %v262
    %v264 = vsel %vm260, %v232, 0.0
    %v265 = vadd.f32 %v263, %v264
    %v266 = vsel %vm260, %v237, 0.0
    %v267 = vadd.f32 %v265, %v266
    %v268 = vsel %vm260, %v242, 0.0
    %v269 = vadd.f32 %v267, %v268
    %v270 = vsel %vm260, %v247, 0.0
    %v271 = vadd.f32 %v269, %v270
    %v272 = vsel %vm260, %v252, 0.0
    %v273 = vadd.f32 %v271, %v272
    %v274 = vsel %vm260, %v257, 0.0
    %v275 = vadd.f32 %v273, %v274
    %v276 = vrot.slane %v275, 4
    %v277 = vadd.f32 %v275, %v276
    %v278 = vrot.slane %v277, 2
    %v279 = vadd.f32 %v277, %v278
    %v280 = vrot.slane %v279, 1
    %v281 = vadd.f32 %v279, %v280
    %283 = vset.pattern.permute.xlu0 0
    %284 = vperm.xlu0 %283, %v61
    %v285 = vpop.permute.xlu0 %284
    %288 = vset.pattern.permute.xlu0 0
    %289 = vperm.xlu0 %288, %v62
    %v290 = vpop.permute.xlu0 %289
    %293 = vset.pattern.permute.xlu0 0
    %294 = vperm.xlu0 %293, %v63
    %v295 = vpop.permute.xlu0 %294
    %298 = vset.pattern.permute.xlu0 0
    %299 = vperm.xlu0 %298, %v64
    %v300 = vpop.permute.xlu0 %299
    %303 = vset.pattern.permute.xlu0 0
    %304 = vperm.xlu0 %303, %v65
    %v305 = vpop.permute.xlu0 %304
    %308 = vset.pattern.permute.xlu0 0
    %309 = vperm.xlu0 %308, %v66
    %v310 = vpop.permute.xlu0 %309
    %313 = vset.pattern.permute.xlu0 0
    %314 = vperm.xlu0 %313, %v67
    %v315 = vpop.permute.xlu0 %314
    %318 = vset.pattern.permute.xlu0 0
    %319 = vperm.xlu0 %318, %v68
    %v320 = vpop.permute.xlu0 %319
    %v322 = vmul.f32 %v222, %v285
    %v323 = vmul.f32 %v227, %v290
    %v324 = vmul.f32 %v232, %v295
    %v325 = vmul.f32 %v237, %v300
    %v326 = vmul.f32 %v242, %v305
    %v327 = vmul.f32 %v247, %v310
    %v328 = vmul.f32 %v252, %v315
    %v329 = vmul.f32 %v257, %v320
    %v330 = vsel %vm260, %v322, 0.0
    %v331 = vsel %vm260, %v323, 0.0
    %v332 = vadd.f32 %v330, %v331
    %v333 = vsel %vm260, %v324, 0.0
    %v334 = vadd.f32 %v332, %v333
    %v335 = vsel %vm260, %v325, 0.0
    %v336 = vadd.f32 %v334, %v335
    %v337 = vsel %vm260, %v326, 0.0
    %v338 = vadd.f32 %v336, %v337
    %v339 = vsel %vm260, %v327, 0.0
    %v340 = vadd.f32 %v338, %v339
    %v341 = vsel %vm260, %v328, 0.0
    %v342 = vadd.f32 %v340, %v341
    %v343 = vsel %vm260, %v329, 0.0
    %v344 = vadd.f32 %v342, %v343
    %v345 = vrot.slane %v344, 4
    %v346 = vadd.f32 %v344, %v345
    %v347 = vrot.slane %v346, 2
    %v348 = vadd.f32 %v346, %v347
    %v349 = vrot.slane %v348, 1
    %v350 = vadd.f32 %v348, %v349
    %v351 = vmul.f32 %v350, 0.03125
    %v352 = vsub.f32 %v281, %v350
    %v353 = vmul.f32 %v352, 0.03125
    %v354 = vsub.f32 %v351, %v353
    %v355 = vmul.f32 %v285, %v354
    %v356 = vmul.f32 %v290, %v354
    %v357 = vmul.f32 %v295, %v354
    %v358 = vmul.f32 %v300, %v354
    %v359 = vmul.f32 %v305, %v354
    %v360 = vmul.f32 %v310, %v354
    %v361 = vmul.f32 %v315, %v354
    %v362 = vmul.f32 %v320, %v354
    %v363 = vadd.f32 %v353, %v355
    %v364 = vadd.f32 %v353, %v356
    %v365 = vadd.f32 %v353, %v357
    %v366 = vadd.f32 %v353, %v358
    %v367 = vadd.f32 %v353, %v359
    %v368 = vadd.f32 %v353, %v360
    %v369 = vadd.f32 %v353, %v361
    %v370 = vadd.f32 %v353, %v362
    %v371 = vsub.f32 %v222, %v363
    %v372 = vsub.f32 %v227, %v364
    %v373 = vsub.f32 %v232, %v365
    %v374 = vsub.f32 %v237, %v366
    %v375 = vsub.f32 %v242, %v367
    %v376 = vsub.f32 %v247, %v368
    %v377 = vsub.f32 %v252, %v369
    %v378 = vsub.f32 %v257, %v370
    %v379 = vmul.f32 %v371, %v371
    %v380 = vmul.f32 %v372, %v372
    %v381 = vmul.f32 %v373, %v373
    %v382 = vmul.f32 %v374, %v374
    %v383 = vmul.f32 %v375, %v375
    %v384 = vmul.f32 %v376, %v376
    %v385 = vmul.f32 %v377, %v377
    %v386 = vmul.f32 %v378, %v378
    %v387 = vsel %vm260, %v379, 0.0
    %v388 = vsel %vm260, %v380, 0.0
    %v389 = vadd.f32 %v387, %v388
    %v390 = vsel %vm260, %v381, 0.0
    %v391 = vadd.f32 %v389, %v390
    %v392 = vsel %vm260, %v382, 0.0
    %v393 = vadd.f32 %v391, %v392
    %v394 = vsel %vm260, %v383, 0.0
    %v395 = vadd.f32 %v393, %v394
    %v396 = vsel %vm260, %v384, 0.0
    %v397 = vadd.f32 %v395, %v396
    %v398 = vsel %vm260, %v385, 0.0
    %v399 = vadd.f32 %v397, %v398
    %v400 = vsel %vm260, %v386, 0.0
    %v401 = vadd.f32 %v399, %v400
    %v402 = vrot.slane %v401, 4
    %v403 = vadd.f32 %v401, %v402
    %v404 = vrot.slane %v403, 2
    %v405 = vadd.f32 %v403, %v404
    %v406 = vrot.slane %v405, 1
    %v407 = vadd.f32 %v405, %v406
    %v408 = vmul.f32 %v379, %v285
    %v409 = vmul.f32 %v380, %v290
    %v410 = vmul.f32 %v381, %v295
    %v411 = vmul.f32 %v382, %v300
    %v412 = vmul.f32 %v383, %v305
    %v413 = vmul.f32 %v384, %v310
    %v414 = vmul.f32 %v385, %v315
    %v415 = vmul.f32 %v386, %v320
    %v416 = vsel %vm260, %v408, 0.0
    %v417 = vsel %vm260, %v409, 0.0
    %v418 = vadd.f32 %v416, %v417
    %v419 = vsel %vm260, %v410, 0.0
    %v420 = vadd.f32 %v418, %v419
    %v421 = vsel %vm260, %v411, 0.0
    %v422 = vadd.f32 %v420, %v421
    %v423 = vsel %vm260, %v412, 0.0
    %v424 = vadd.f32 %v422, %v423
    %v425 = vsel %vm260, %v413, 0.0
    %v426 = vadd.f32 %v424, %v425
    %v427 = vsel %vm260, %v414, 0.0
    %v428 = vadd.f32 %v426, %v427
    %v429 = vsel %vm260, %v415, 0.0
    %v430 = vadd.f32 %v428, %v429
    %v431 = vrot.slane %v430, 4
    %v432 = vadd.f32 %v430, %v431
    %v433 = vrot.slane %v432, 2
    %v434 = vadd.f32 %v432, %v433
    %v435 = vrot.slane %v434, 1
    %v436 = vadd.f32 %v434, %v435
    %v437 = vmul.f32 %v436, 0.03125
    %v438 = vsub.f32 %v407, %v436
    %v439 = vmul.f32 %v438, 0.03125
    %v440 = vsub.f32 %v437, %v439
    %v441 = vmul.f32 %v285, %v440
    %v442 = vmul.f32 %v290, %v440
    %v443 = vmul.f32 %v295, %v440
    %v444 = vmul.f32 %v300, %v440
    %v445 = vmul.f32 %v305, %v440
    %v446 = vmul.f32 %v310, %v440
    %v447 = vmul.f32 %v315, %v440
    %v448 = vmul.f32 %v320, %v440
    %v449 = vadd.f32 %v439, %v441
    %v450 = vadd.f32 %v439, %v442
    %v451 = vadd.f32 %v439, %v443
    %v452 = vadd.f32 %v439, %v444
    %v453 = vadd.f32 %v439, %v445
    %v454 = vadd.f32 %v439, %v446
    %v455 = vadd.f32 %v439, %v447
    %v456 = vadd.f32 %v439, %v448
    %v457 = vadd.f32 %v449, 1e-05
    %v458 = vadd.f32 %v450, 1e-05
    %v459 = vadd.f32 %v451, 1e-05
    %v460 = vadd.f32 %v452, 1e-05
    %v461 = vadd.f32 %v453, 1e-05
    %v462 = vadd.f32 %v454, 1e-05
    %v463 = vadd.f32 %v455, 1e-05
    %v464 = vadd.f32 %v456, 1e-05
    %v465 = vrsqrt.pop %v457
    %v466 = vrsqrt.pop %v458
    %v467 = vrsqrt.pop %v459
    %v468 = vrsqrt.pop %v460
    %v469 = vrsqrt.pop %v461
    %v470 = vrsqrt.pop %v462
    %v471 = vrsqrt.pop %v463
    %v472 = vrsqrt.pop %v464
    %v473 = vmul.f32 %v371, %v465
    %v474 = vmul.f32 %v372, %v466
    %v475 = vmul.f32 %v373, %v467
    %v476 = vmul.f32 %v374, %v468
    %v477 = vmul.f32 %v375, %v469
    %v478 = vmul.f32 %v376, %v470
    %v479 = vmul.f32 %v377, %v471
    %v480 = vmul.f32 %v378, %v472
    %v482 = vlaneseq
    %v483 = vshrl.u32 %v482, 7
    %v484 = vsub.s32 0, %v483
    %v485 = vrot.slane %v71, %v484
    %v487 = vmul.f32 %v473, %v485
    %v488 = vmul.f32 %v474, %v485
    %v489 = vmul.f32 %v475, %v485
    %v490 = vmul.f32 %v476, %v485
    %v491 = vmul.f32 %v477, %v485
    %v492 = vmul.f32 %v478, %v485
    %v493 = vmul.f32 %v479, %v485
    %v494 = vmul.f32 %v480, %v485
    %v496 = vlaneseq
    %v497 = vshrl.u32 %v496, 7
    %v498 = vsub.s32 0, %v497
    %v499 = vrot.slane %v72, %v498
    %v501 = vadd.f32 %v487, %v499
    %v502 = vadd.f32 %v488, %v499
    %v503 = vadd.f32 %v489, %v499
    %v504 = vadd.f32 %v490, %v499
    %v505 = vadd.f32 %v491, %v499
    %v506 = vadd.f32 %v492, %v499
    %v507 = vadd.f32 %v493, %v499
    %v508 = vadd.f32 %v494, %v499
    %v509 = vmax.f32 %v501, 0.0
    %v510 = vmax.f32 %v502, 0.0
    %v511 = vmax.f32 %v503, 0.0
    %v512 = vmax.f32 %v504, 0.0
    %v513 = vmax.f32 %v505, 0.0
    %v514 = vmax.f32 %v506, 0.0
    %v515 = vmax.f32 %v507, 0.0
    %v516 = vmax.f32 %v508, 0.0
    %v518 = vlaneseq
    %v519 = vshrl.u32 %v518, 7
    %v520 = vsub.s32 0, %v519
    %v521 = vrot.slane %v81, %v520
    %v524 = vsel %vm260, %v509, 0
    %v527 = vsel %vm260, %v510, 0
    %v530 = vsel %vm260, %v511, 0
    %v533 = vsel %vm260, %v512, 0
    %v536 = vsel %vm260, %v513, 0
    %v539 = vsel %vm260, %v514, 0
    %v542 = vsel %vm260, %v515, 0
    %v545 = vsel %vm260, %v516, 0
    %547 = vmatprep.subr.mxu0 0.0
    %548 = vmatpush1.msra.mxu0 0.0
    %549 = vmatprep.subr.mxu0 0.0
    %550 = vmatpush1.msra.mxu0 0.0
    %551 = vmatprep.subr.mxu0 0.0
    %552 = vmatpush1.msra.mxu0 0.0
    %553 = vmatprep.subr.mxu0 0.0
    %554 = vmatpush1.msra.mxu0 0.0
    %555 = vmatprep.subr.mxu0 0.0
    %556 = vmatpush1.msra.mxu0 0.0
    %557 = vmatprep.subr.mxu0 0.0
    %558 = vmatpush1.msra.mxu0 0.0
    %559 = vmatprep.subr.mxu0 0.0
    %560 = vmatpush1.msra.mxu0 0.0
    %561 = vmatprep.subr.mxu0 0.0
    %562 = vmatpush1.msra.mxu0 0.0
    %563 = vmatprep.subr.mxu0 0.0
    %564 = vmatpush1.msra.mxu0 %v80
    %565 = vmatprep.subr.mxu0 0.0
    %566 = vmatpush1.msra.mxu0 %v79
    %567 = vmatprep.subr.mxu0 0.0
    %568 = vmatpush1.msra.mxu0 %v78
    %569 = vmatprep.subr.mxu0 0.0
    %570 = vmatpush1.msra.mxu0 %v77
    %571 = vmatprep.subr.mxu0 0.0
    %572 = vmatpush1.msra.mxu0 %v76
    %573 = vmatprep.subr.mxu0 0.0
    %574 = vmatpush1.msra.mxu0 %v75
    %575 = vmatprep.subr.mxu0 0.0
    %576 = vmatpush1.msra.mxu0 %v74
    %577 = vmatprep.subr.mxu0 0.0
    %578 = vmatpush1.msra.mxu0 %v73
    %579 = vmatprep.subr.mxu0 0.0
    %580 = vmatpush2.msra.mxu0 0.0
    %581 = vmatprep.subr.mxu0 0.0
    %582 = vmatpush2.msra.mxu0 0.0
    %583 = vmatprep.subr.mxu0 0.0
    %584 = vmatpush2.msra.mxu0 0.0
    %585 = vmatprep.subr.mxu0 0.0
    %586 = vmatpush2.msra.mxu0 0.0
    %587 = vmatprep.subr.mxu0 0.0
    %588 = vmatpush2.msra.mxu0 0.0
    %589 = vmatprep.subr.mxu0 0.0
    %590 = vmatpush2.msra.mxu0 0.0
    %591 = vmatprep.subr.mxu0 0.0
    %592 = vmatpush2.msra.mxu0 0.0
    %593 = vmatprep.subr.mxu0 0.0
    %594 = vmatpush2.msra.mxu0 0.0
    %595 = vmatprep.subr.mxu0 0.0
    %596 = vmatpush2.msra.mxu0 0.0
    %597 = vmatprep.subr.mxu0 0.0
    %598 = vmatpush2.msra.mxu0 0.0
    %599 = vmatprep.subr.mxu0 0.0
    %600 = vmatpush2.msra.mxu0 0.0
    %601 = vmatprep.subr.mxu0 0.0
    %602 = vmatpush2.msra.mxu0 0.0
    %603 = vmatprep.subr.mxu0 0.0
    %604 = vmatpush2.msra.mxu0 0.0
    %605 = vmatprep.subr.mxu0 0.0
    %606 = vmatpush2.msra.mxu0 0.0
    %607 = vmatprep.subr.mxu0 0.0
    %608 = vmatpush2.msra.mxu0 0.0
    %609 = vmatprep.subr.mxu0 0.0
    %610 = vmatpush2.msra.mxu0 0.0
    %611 = vmatprep.mubr.f32.mxu0 0.0
    %612 = vmatmul.mubr.f32.gmra.mxu0 %v524
    %v613 = vpop.f32.mrf.mxu0
    %v614 = vadd.f32 %v521, %v613
    %v615 = vpop.f32.mrf.mxu0
    %616 = vmatprep.mubr.f32.mxu0 0.0
    %617 = vmatmul.mubr.f32.gmra.mxu0 %v527
    %v618 = vpop.f32.mrf.mxu0
    %v619 = vadd.f32 %v521, %v618
    %v620 = vpop.f32.mrf.mxu0
    %621 = vmatprep.mubr.f32.mxu0 0.0
    %622 = vmatmul.mubr.f32.gmra.mxu0 %v530
    %v623 = vpop.f32.mrf.mxu0
    %v624 = vadd.f32 %v521, %v623
    %v625 = vpop.f32.mrf.mxu0
    %626 = vmatprep.mubr.f32.mxu0 0.0
    %627 = vmatmul.mubr.f32.gmra.mxu0 %v533
    %v628 = vpop.f32.mrf.mxu0
    %v629 = vadd.f32 %v521, %v628
    %v630 = vpop.f32.mrf.mxu0
    %631 = vmatprep.mubr.f32.mxu0 0.0
    %632 = vmatmul.mubr.f32.gmra.mxu0 %v536
    %v633 = vpop.f32.mrf.mxu0
    %v634 = vadd.f32 %v521, %v633
    %v635 = vpop.f32.mrf.mxu0
    %636 = vmatprep.mubr.f32.mxu0 0.0
    %637 = vmatmul.mubr.f32.gmra.mxu0 %v539
    %v638 = vpop.f32.mrf.mxu0
    %v639 = vadd.f32 %v521, %v638
    %v640 = vpop.f32.mrf.mxu0
    %641 = vmatprep.mubr.f32.mxu0 0.0
    %642 = vmatmul.mubr.f32.gmra.mxu0 %v542
    %v643 = vpop.f32.mrf.mxu0
    %v644 = vadd.f32 %v521, %v643
    %v645 = vpop.f32.mrf.mxu0
    %646 = vmatprep.mubr.f32.mxu0 0.0
    %647 = vmatmul.mubr.f32.gmra.mxu0 %v545
    %v648 = vpop.f32.mrf.mxu0
    %v649 = vadd.f32 %v521, %v648
    %v650 = vpop.f32.mrf.mxu0
    %651 = vdwg.mxu0
    %v652 = vmul.f32 %v614, %v614
    %v653 = vmul.f32 %v619, %v619
    %v654 = vmul.f32 %v624, %v624
    %v655 = vmul.f32 %v629, %v629
    %v656 = vmul.f32 %v634, %v634
    %v657 = vmul.f32 %v639, %v639
    %v658 = vmul.f32 %v644, %v644
    %v659 = vmul.f32 %v649, %v649
    %vm660 = vcmask 261120
    %v661 = vsel %vm660, %v652, 0.0
    %662 = vadd.xlane.f32.xlu0 %v661
    %v663 = vpop.xlane.xlu0 %662
    %v664 = vsel %vm660, %v653, 0.0
    %665 = vadd.xlane.f32.xlu0 %v664
    %v666 = vpop.xlane.xlu0 %665
    %v667 = vsel %vm660, %v654, 0.0
    %668 = vadd.xlane.f32.xlu0 %v667
    %v669 = vpop.xlane.xlu0 %668
    %v670 = vsel %vm660, %v655, 0.0
    %671 = vadd.xlane.f32.xlu0 %v670
    %v672 = vpop.xlane.xlu0 %671
    %v673 = vsel %vm660, %v656, 0.0
    %674 = vadd.xlane.f32.xlu0 %v673
    %v675 = vpop.xlane.xlu0 %674
    %v676 = vsel %vm660, %v657, 0.0
    %677 = vadd.xlane.f32.xlu0 %v676
    %v678 = vpop.xlane.xlu0 %677
    %v679 = vsel %vm660, %v658, 0.0
    %680 = vadd.xlane.f32.xlu0 %v679
    %v681 = vpop.xlane.xlu0 %680
    %v682 = vsel %vm660, %v659, 0.0
    %683 = vadd.xlane.f32.xlu0 %v682
    %v684 = vpop.xlane.xlu0 %683
    %v685 = vmax.f32 %v663, 1e-16
    %v686 = vmax.f32 %v666, 1e-16
    %v687 = vmax.f32 %v669, 1e-16
    %v688 = vmax.f32 %v672, 1e-16
    %v689 = vmax.f32 %v675, 1e-16
    %v690 = vmax.f32 %v678, 1e-16
    %v691 = vmax.f32 %v681, 1e-16
    %v692 = vmax.f32 %v684, 1e-16
    %v693 = vrsqrt.pop %v685
    %v694 = vrsqrt.pop %v686
    %v695 = vrsqrt.pop %v687
    %v696 = vrsqrt.pop %v688
    %v697 = vrsqrt.pop %v689
    %v698 = vrsqrt.pop %v690
    %v699 = vrsqrt.pop %v691
    %v700 = vrsqrt.pop %v692
    %v701 = vmul.f32 %v614, %v693
    %v702 = vmul.f32 %v619, %v694
    %v703 = vmul.f32 %v624, %v695
    %v704 = vmul.f32 %v629, %v696
    %v705 = vmul.f32 %v634, %v697
    %v706 = vmul.f32 %v639, %v698
    %v707 = vmul.f32 %v644, %v699
    %v708 = vmul.f32 %v649, %v700
    %v710 = vsel %vm660, %v701, 0
    %v713 = vsel %vm660, %v702, 0
    %v716 = vsel %vm660, %v703, 0
    %v719 = vsel %vm660, %v704, 0
    %v722 = vsel %vm660, %v705, 0
    %v725 = vsel %vm660, %v706, 0
    %v728 = vsel %vm660, %v707, 0
    %v731 = vsel %vm660, %v708, 0
    %733 = vmatprep.subr.mxu0 0.0
    %734 = vmatpush1.xpose.msra.mxu0 0.0
    %735 = vmatprep.subr.mxu0 0.0
    %736 = vmatpush1.xpose.msra.mxu0 0.0
    %737 = vmatprep.subr.mxu0 0.0
    %738 = vmatpush1.xpose.msra.mxu0 0.0
    %739 = vmatprep.subr.mxu0 0.0
    %740 = vmatpush1.xpose.msra.mxu0 0.0
    %741 = vmatprep.subr.mxu0 0.0
    %742 = vmatpush1.xpose.msra.mxu0 0.0
    %743 = vmatprep.subr.mxu0 0.0
    %744 = vmatpush1.xpose.msra.mxu0 0.0
    %745 = vmatprep.subr.mxu0 0.0
    %746 = vmatpush1.xpose.msra.mxu0 0.0
    %747 = vmatprep.subr.mxu0 0.0
    %748 = vmatpush1.xpose.msra.mxu0 0.0
    %749 = vmatprep.subr.mxu0 0.0
    %750 = vmatpush1.xpose.msra.mxu0 %v731
    %751 = vmatprep.subr.mxu0 0.0
    %752 = vmatpush1.xpose.msra.mxu0 %v728
    %753 = vmatprep.subr.mxu0 0.0
    %754 = vmatpush1.xpose.msra.mxu0 %v725
    %755 = vmatprep.subr.mxu0 0.0
    %756 = vmatpush1.xpose.msra.mxu0 %v722
    %757 = vmatprep.subr.mxu0 0.0
    %758 = vmatpush1.xpose.msra.mxu0 %v719
    %759 = vmatprep.subr.mxu0 0.0
    %760 = vmatpush1.xpose.msra.mxu0 %v716
    %761 = vmatprep.subr.mxu0 0.0
    %762 = vmatpush1.xpose.msra.mxu0 %v713
    %763 = vmatprep.subr.mxu0 0.0
    %764 = vmatpush1.xpose.msra.mxu0 %v710
    %765 = vmatprep.subr.mxu0 0.0
    %766 = vmatpush2.xpose.msra.mxu0 0.0
    %767 = vmatprep.subr.mxu0 0.0
    %768 = vmatpush2.xpose.msra.mxu0 0.0
    %769 = vmatprep.subr.mxu0 0.0
    %770 = vmatpush2.xpose.msra.mxu0 0.0
    %771 = vmatprep.subr.mxu0 0.0
    %772 = vmatpush2.xpose.msra.mxu0 0.0
    %773 = vmatprep.subr.mxu0 0.0
    %774 = vmatpush2.xpose.msra.mxu0 0.0
    %775 = vmatprep.subr.mxu0 0.0
    %776 = vmatpush2.xpose.msra.mxu0 0.0
    %777 = vmatprep.subr.mxu0 0.0
    %778 = vmatpush2.xpose.msra.mxu0 0.0
    %779 = vmatprep.subr.mxu0 0.0
    %780 = vmatpush2.xpose.msra.mxu0 0.0
    %781 = vmatprep.subr.mxu0 0.0
    %782 = vmatpush2.xpose.msra.mxu0 0.0
    %783 = vmatprep.subr.mxu0 0.0
    %784 = vmatpush2.xpose.msra.mxu0 0.0
    %785 = vmatprep.subr.mxu0 0.0
    %786 = vmatpush2.xpose.msra.mxu0 0.0
    %787 = vmatprep.subr.mxu0 0.0
    %788 = vmatpush2.xpose.msra.mxu0 0.0
    %789 = vmatprep.subr.mxu0 0.0
    %790 = vmatpush2.xpose.msra.mxu0 0.0
    %791 = vmatprep.subr.mxu0 0.0
    %792 = vmatpush2.xpose.msra.mxu0 0.0
    %793 = vmatprep.subr.mxu0 0.0
    %794 = vmatpush2.xpose.msra.mxu0 0.0
    %795 = vmatprep.subr.mxu0 0.0
    %796 = vmatpush2.xpose.msra.mxu0 0.0
    %797 = vmatprep.mubr.f32.mxu0 0.0
    %798 = vmatmul.mubr.f32.gmra.mxu0 %v710
    %v799 = vpop.f32.mrf.mxu0
    %v800 = vadd.f32 0.0, %v799
    %v801 = vpop.f32.mrf.mxu0
    %802 = vmatprep.mubr.f32.mxu0 0.0
    %803 = vmatmul.mubr.f32.gmra.mxu0 %v713
    %v804 = vpop.f32.mrf.mxu0
    %v805 = vadd.f32 0.0, %v804
    %v806 = vpop.f32.mrf.mxu0
    %807 = vmatprep.mubr.f32.mxu0 0.0
    %808 = vmatmul.mubr.f32.gmra.mxu0 %v716
    %v809 = vpop.f32.mrf.mxu0
    %v810 = vadd.f32 0.0, %v809
    %v811 = vpop.f32.mrf.mxu0
    %812 = vmatprep.mubr.f32.mxu0 0.0
    %813 = vmatmul.mubr.f32.gmra.mxu0 %v719
    %v814 = vpop.f32.mrf.mxu0
    %v815 = vadd.f32 0.0, %v814
    %v816 = vpop.f32.mrf.mxu0
    %817 = vmatprep.mubr.f32.mxu0 0.0
    %818 = vmatmul.mubr.f32.gmra.mxu0 %v722
    %v819 = vpop.f32.mrf.mxu0
    %v820 = vadd.f32 0.0, %v819
    %v821 = vpop.f32.mrf.mxu0
    %822 = vmatprep.mubr.f32.mxu0 0.0
    %823 = vmatmul.mubr.f32.gmra.mxu0 %v725
    %v824 = vpop.f32.mrf.mxu0
    %v825 = vadd.f32 0.0, %v824
    %v826 = vpop.f32.mrf.mxu0
    %827 = vmatprep.mubr.f32.mxu0 0.0
    %828 = vmatmul.mubr.f32.gmra.mxu0 %v728
    %v829 = vpop.f32.mrf.mxu0
    %v830 = vadd.f32 0.0, %v829
    %v831 = vpop.f32.mrf.mxu0
    %832 = vmatprep.mubr.f32.mxu0 0.0
    %833 = vmatmul.mubr.f32.gmra.mxu0 %v731
    %v834 = vpop.f32.mrf.mxu0
    %v835 = vadd.f32 0.0, %v834
    %v836 = vpop.f32.mrf.mxu0
    %837 = vdwg.mxu0
    %v839 = vlaneseq
    %v840 = vshrl.u32 %v839, 7
    %v841 = vsub.s32 0, %v840
    %v842 = vrot.slane %v86, %v841
    %v845 = vsel %vm660, %v614, 0
    %v848 = vsel %vm660, %v619, 0
    %v851 = vsel %vm660, %v624, 0
    %v854 = vsel %vm660, %v629, 0
    %v857 = vsel %vm660, %v634, 0
    %v860 = vsel %vm660, %v639, 0
    %v863 = vsel %vm660, %v644, 0
    %v866 = vsel %vm660, %v649, 0
    %868 = vmatprep.subr.mxu0 0.0
    %869 = vmatpush1.msra.mxu0 0.0
    %870 = vmatprep.subr.mxu0 0.0
    %871 = vmatpush1.msra.mxu0 0.0
    %872 = vmatprep.subr.mxu0 0.0
    %873 = vmatpush1.msra.mxu0 0.0
    %874 = vmatprep.subr.mxu0 0.0
    %875 = vmatpush1.msra.mxu0 0.0
    %876 = vmatprep.subr.mxu0 0.0
    %877 = vmatpush1.msra.mxu0 0.0
    %878 = vmatprep.subr.mxu0 0.0
    %879 = vmatpush1.msra.mxu0 0.0
    %880 = vmatprep.subr.mxu0 0.0
    %881 = vmatpush1.msra.mxu0 0.0
    %882 = vmatprep.subr.mxu0 0.0
    %883 = vmatpush1.msra.mxu0 0.0
    %884 = vmatprep.subr.mxu0 0.0
    %885 = vmatpush1.msra.mxu0 0.0
    %886 = vmatprep.subr.mxu0 0.0
    %887 = vmatpush1.msra.mxu0 0.0
    %888 = vmatprep.subr.mxu0 0.0
    %889 = vmatpush1.msra.mxu0 0.0
    %890 = vmatprep.subr.mxu0 0.0
    %891 = vmatpush1.msra.mxu0 0.0
    %892 = vmatprep.subr.mxu0 0.0
    %893 = vmatpush1.msra.mxu0 %v85
    %894 = vmatprep.subr.mxu0 0.0
    %895 = vmatpush1.msra.mxu0 %v84
    %896 = vmatprep.subr.mxu0 0.0
    %897 = vmatpush1.msra.mxu0 %v83
    %898 = vmatprep.subr.mxu0 0.0
    %899 = vmatpush1.msra.mxu0 %v82
    %900 = vmatprep.subr.mxu0 0.0
    %901 = vmatpush2.msra.mxu0 0.0
    %902 = vmatprep.subr.mxu0 0.0
    %903 = vmatpush2.msra.mxu0 0.0
    %904 = vmatprep.subr.mxu0 0.0
    %905 = vmatpush2.msra.mxu0 0.0
    %906 = vmatprep.subr.mxu0 0.0
    %907 = vmatpush2.msra.mxu0 0.0
    %908 = vmatprep.subr.mxu0 0.0
    %909 = vmatpush2.msra.mxu0 0.0
    %910 = vmatprep.subr.mxu0 0.0
    %911 = vmatpush2.msra.mxu0 0.0
    %912 = vmatprep.subr.mxu0 0.0
    %913 = vmatpush2.msra.mxu0 0.0
    %914 = vmatprep.subr.mxu0 0.0
    %915 = vmatpush2.msra.mxu0 0.0
    %916 = vmatprep.subr.mxu0 0.0
    %917 = vmatpush2.msra.mxu0 0.0
    %918 = vmatprep.subr.mxu0 0.0
    %919 = vmatpush2.msra.mxu0 0.0
    %920 = vmatprep.subr.mxu0 0.0
    %921 = vmatpush2.msra.mxu0 0.0
    %922 = vmatprep.subr.mxu0 0.0
    %923 = vmatpush2.msra.mxu0 0.0
    %924 = vmatprep.subr.mxu0 0.0
    %925 = vmatpush2.msra.mxu0 0.0
    %926 = vmatprep.subr.mxu0 0.0
    %927 = vmatpush2.msra.mxu0 0.0
    %928 = vmatprep.subr.mxu0 0.0
    %929 = vmatpush2.msra.mxu0 0.0
    %930 = vmatprep.subr.mxu0 0.0
    %931 = vmatpush2.msra.mxu0 0.0
    %932 = vmatprep.mubr.f32.mxu0 0.0
    %933 = vmatmul.mubr.f32.gmra.mxu0 %v845
    %v934 = vpop.f32.mrf.mxu0
    %v935 = vadd.f32 %v842, %v934
    %v936 = vpop.f32.mrf.mxu0
    %937 = vmatprep.mubr.f32.mxu0 0.0
    %938 = vmatmul.mubr.f32.gmra.mxu0 %v848
    %v939 = vpop.f32.mrf.mxu0
    %v940 = vadd.f32 %v842, %v939
    %v941 = vpop.f32.mrf.mxu0
    %942 = vmatprep.mubr.f32.mxu0 0.0
    %943 = vmatmul.mubr.f32.gmra.mxu0 %v851
    %v944 = vpop.f32.mrf.mxu0
    %v945 = vadd.f32 %v842, %v944
    %v946 = vpop.f32.mrf.mxu0
    %947 = vmatprep.mubr.f32.mxu0 0.0
    %948 = vmatmul.mubr.f32.gmra.mxu0 %v854
    %v949 = vpop.f32.mrf.mxu0
    %v950 = vadd.f32 %v842, %v949
    %v951 = vpop.f32.mrf.mxu0
    %952 = vmatprep.mubr.f32.mxu0 0.0
    %953 = vmatmul.mubr.f32.gmra.mxu0 %v857
    %v954 = vpop.f32.mrf.mxu0
    %v955 = vadd.f32 %v842, %v954
    %v956 = vpop.f32.mrf.mxu0
    %957 = vmatprep.mubr.f32.mxu0 0.0
    %958 = vmatmul.mubr.f32.gmra.mxu0 %v860
    %v959 = vpop.f32.mrf.mxu0
    %v960 = vadd.f32 %v842, %v959
    %v961 = vpop.f32.mrf.mxu0
    %962 = vmatprep.mubr.f32.mxu0 0.0
    %963 = vmatmul.mubr.f32.gmra.mxu0 %v863
    %v964 = vpop.f32.mrf.mxu0
    %v965 = vadd.f32 %v842, %v964
    %v966 = vpop.f32.mrf.mxu0
    %967 = vmatprep.mubr.f32.mxu0 0.0
    %968 = vmatmul.mubr.f32.gmra.mxu0 %v866
    %v969 = vpop.f32.mrf.mxu0
    %v970 = vadd.f32 %v842, %v969
    %v971 = vpop.f32.mrf.mxu0
    %972 = vdwg.mxu0
    %v973 = vmax.f32 %v800, 0.0
    %v974 = vmax.f32 %v805, 0.0
    %v975 = vmax.f32 %v810, 0.0
    %v976 = vmax.f32 %v815, 0.0
    %v977 = vmax.f32 %v820, 0.0
    %v978 = vmax.f32 %v825, 0.0
    %v979 = vmax.f32 %v830, 0.0
    %v980 = vmax.f32 %v835, 0.0
    %v981 = vmul.f32 %v973, %v973
    %v982 = vmul.f32 %v974, %v974
    %v983 = vmul.f32 %v975, %v975
    %v984 = vmul.f32 %v976, %v976
    %v985 = vmul.f32 %v977, %v977
    %v986 = vmul.f32 %v978, %v978
    %v987 = vmul.f32 %v979, %v979
    %v988 = vmul.f32 %v980, %v980
    %v989 = vmul.f32 %v981, %v87
    %v990 = vmul.f32 %v982, %v88
    %v991 = vmul.f32 %v983, %v89
    %v992 = vmul.f32 %v984, %v90
    %v993 = vmul.f32 %v985, %v91
    %v994 = vmul.f32 %v986, %v92
    %v995 = vmul.f32 %v987, %v93
    %v996 = vmul.f32 %v988, %v94
    %v998 = vsel %vm260, %v989, 0
    %v1001 = vsel %vm260, %v990, 0
    %v1004 = vsel %vm260, %v991, 0
    %v1007 = vsel %vm260, %v992, 0
    %v1010 = vsel %vm260, %v993, 0
    %v1013 = vsel %vm260, %v994, 0
    %v1016 = vsel %vm260, %v995, 0
    %v1019 = vsel %vm260, %v996, 0
    %1021 = vmatprep.subr.mxu0 0.0
    %1022 = vmatpush1.msra.mxu0 0.0
    %1023 = vmatprep.subr.mxu0 0.0
    %1024 = vmatpush1.msra.mxu0 0.0
    %1025 = vmatprep.subr.mxu0 0.0
    %1026 = vmatpush1.msra.mxu0 0.0
    %1027 = vmatprep.subr.mxu0 0.0
    %1028 = vmatpush1.msra.mxu0 0.0
    %1029 = vmatprep.subr.mxu0 0.0
    %1030 = vmatpush1.msra.mxu0 0.0
    %1031 = vmatprep.subr.mxu0 0.0
    %1032 = vmatpush1.msra.mxu0 0.0
    %1033 = vmatprep.subr.mxu0 0.0
    %1034 = vmatpush1.msra.mxu0 0.0
    %1035 = vmatprep.subr.mxu0 0.0
    %1036 = vmatpush1.msra.mxu0 0.0
    %1037 = vmatprep.subr.mxu0 0.0
    %1038 = vmatpush1.msra.mxu0 %v970
    %1039 = vmatprep.subr.mxu0 0.0
    %1040 = vmatpush1.msra.mxu0 %v965
    %1041 = vmatprep.subr.mxu0 0.0
    %1042 = vmatpush1.msra.mxu0 %v960
    %1043 = vmatprep.subr.mxu0 0.0
    %1044 = vmatpush1.msra.mxu0 %v955
    %1045 = vmatprep.subr.mxu0 0.0
    %1046 = vmatpush1.msra.mxu0 %v950
    %1047 = vmatprep.subr.mxu0 0.0
    %1048 = vmatpush1.msra.mxu0 %v945
    %1049 = vmatprep.subr.mxu0 0.0
    %1050 = vmatpush1.msra.mxu0 %v940
    %1051 = vmatprep.subr.mxu0 0.0
    %1052 = vmatpush1.msra.mxu0 %v935
    %1053 = vmatprep.subr.mxu0 0.0
    %1054 = vmatpush2.msra.mxu0 0.0
    %1055 = vmatprep.subr.mxu0 0.0
    %1056 = vmatpush2.msra.mxu0 0.0
    %1057 = vmatprep.subr.mxu0 0.0
    %1058 = vmatpush2.msra.mxu0 0.0
    %1059 = vmatprep.subr.mxu0 0.0
    %1060 = vmatpush2.msra.mxu0 0.0
    %1061 = vmatprep.subr.mxu0 0.0
    %1062 = vmatpush2.msra.mxu0 0.0
    %1063 = vmatprep.subr.mxu0 0.0
    %1064 = vmatpush2.msra.mxu0 0.0
    %1065 = vmatprep.subr.mxu0 0.0
    %1066 = vmatpush2.msra.mxu0 0.0
    %1067 = vmatprep.subr.mxu0 0.0
    %1068 = vmatpush2.msra.mxu0 0.0
    %1069 = vmatprep.subr.mxu0 0.0
    %1070 = vmatpush2.msra.mxu0 0.0
    %1071 = vmatprep.subr.mxu0 0.0
    %1072 = vmatpush2.msra.mxu0 0.0
    %1073 = vmatprep.subr.mxu0 0.0
    %1074 = vmatpush2.msra.mxu0 0.0
    %1075 = vmatprep.subr.mxu0 0.0
    %1076 = vmatpush2.msra.mxu0 0.0
    %1077 = vmatprep.subr.mxu0 0.0
    %1078 = vmatpush2.msra.mxu0 0.0
    %1079 = vmatprep.subr.mxu0 0.0
    %1080 = vmatpush2.msra.mxu0 0.0
    %1081 = vmatprep.subr.mxu0 0.0
    %1082 = vmatpush2.msra.mxu0 0.0
    %1083 = vmatprep.subr.mxu0 0.0
    %1084 = vmatpush2.msra.mxu0 0.0
    %1085 = vmatprep.mubr.f32.mxu0 0.0
    %1086 = vmatmul.mubr.f32.gmra.mxu0 %v998
    %v1087 = vpop.f32.mrf.mxu0
    %v1088 = vadd.f32 0.0, %v1087
    %v1089 = vpop.f32.mrf.mxu0
    %1090 = vmatprep.mubr.f32.mxu0 0.0
    %1091 = vmatmul.mubr.f32.gmra.mxu0 %v1001
    %v1092 = vpop.f32.mrf.mxu0
    %v1093 = vadd.f32 0.0, %v1092
    %v1094 = vpop.f32.mrf.mxu0
    %1095 = vmatprep.mubr.f32.mxu0 0.0
    %1096 = vmatmul.mubr.f32.gmra.mxu0 %v1004
    %v1097 = vpop.f32.mrf.mxu0
    %v1098 = vadd.f32 0.0, %v1097
    %v1099 = vpop.f32.mrf.mxu0
    %1100 = vmatprep.mubr.f32.mxu0 0.0
    %1101 = vmatmul.mubr.f32.gmra.mxu0 %v1007
    %v1102 = vpop.f32.mrf.mxu0
    %v1103 = vadd.f32 0.0, %v1102
    %v1104 = vpop.f32.mrf.mxu0
    %1105 = vmatprep.mubr.f32.mxu0 0.0
    %1106 = vmatmul.mubr.f32.gmra.mxu0 %v1010
    %v1107 = vpop.f32.mrf.mxu0
    %v1108 = vadd.f32 0.0, %v1107
    %v1109 = vpop.f32.mrf.mxu0
    %1110 = vmatprep.mubr.f32.mxu0 0.0
    %1111 = vmatmul.mubr.f32.gmra.mxu0 %v1013
    %v1112 = vpop.f32.mrf.mxu0
    %v1113 = vadd.f32 0.0, %v1112
    %v1114 = vpop.f32.mrf.mxu0
    %1115 = vmatprep.mubr.f32.mxu0 0.0
    %1116 = vmatmul.mubr.f32.gmra.mxu0 %v1016
    %v1117 = vpop.f32.mrf.mxu0
    %v1118 = vadd.f32 0.0, %v1117
    %v1119 = vpop.f32.mrf.mxu0
    %1120 = vmatprep.mubr.f32.mxu0 0.0
    %1121 = vmatmul.mubr.f32.gmra.mxu0 %v1019
    %v1122 = vpop.f32.mrf.mxu0
    %v1123 = vadd.f32 0.0, %v1122
    %v1124 = vpop.f32.mrf.mxu0
    %1125 = vdwg.mxu0
    %v1126 = vmul.f32 %v1088, %v1088
    %v1127 = vmul.f32 %v1093, %v1093
    %v1128 = vmul.f32 %v1098, %v1098
    %v1129 = vmul.f32 %v1103, %v1103
    %v1130 = vmul.f32 %v1108, %v1108
    %v1131 = vmul.f32 %v1113, %v1113
    %v1132 = vmul.f32 %v1118, %v1118
    %v1133 = vmul.f32 %v1123, %v1123
    %v1134 = vsel %vm660, %v1126, 0.0
    %1135 = vadd.xlane.f32.xlu0 %v1134
    %v1136 = vpop.xlane.xlu0 %1135
    %v1137 = vsel %vm660, %v1127, 0.0
    %1138 = vadd.xlane.f32.xlu0 %v1137
    %v1139 = vpop.xlane.xlu0 %1138
    %v1140 = vsel %vm660, %v1128, 0.0
    %1141 = vadd.xlane.f32.xlu0 %v1140
    %v1142 = vpop.xlane.xlu0 %1141
    %v1143 = vsel %vm660, %v1129, 0.0
    %1144 = vadd.xlane.f32.xlu0 %v1143
    %v1145 = vpop.xlane.xlu0 %1144
    %v1146 = vsel %vm660, %v1130, 0.0
    %1147 = vadd.xlane.f32.xlu0 %v1146
    %v1148 = vpop.xlane.xlu0 %1147
    %v1149 = vsel %vm660, %v1131, 0.0
    %1150 = vadd.xlane.f32.xlu0 %v1149
    %v1151 = vpop.xlane.xlu0 %1150
    %v1152 = vsel %vm660, %v1132, 0.0
    %1153 = vadd.xlane.f32.xlu0 %v1152
    %v1154 = vpop.xlane.xlu0 %1153
    %v1155 = vsel %vm660, %v1133, 0.0
    %1156 = vadd.xlane.f32.xlu0 %v1155
    %v1157 = vpop.xlane.xlu0 %1156
    %v1158 = vmax.f32 %v1136, 1e-16
    %v1159 = vmax.f32 %v1139, 1e-16
    %v1160 = vmax.f32 %v1142, 1e-16
    %v1161 = vmax.f32 %v1145, 1e-16
    %v1162 = vmax.f32 %v1148, 1e-16
    %v1163 = vmax.f32 %v1151, 1e-16
    %v1164 = vmax.f32 %v1154, 1e-16
    %v1165 = vmax.f32 %v1157, 1e-16
    %v1166 = vrsqrt.pop %v1158
    %v1167 = vrsqrt.pop %v1159
    %v1168 = vrsqrt.pop %v1160
    %v1169 = vrsqrt.pop %v1161
    %v1170 = vrsqrt.pop %v1162
    %v1171 = vrsqrt.pop %v1163
    %v1172 = vrsqrt.pop %v1164
    %v1173 = vrsqrt.pop %v1165
    %v1174 = vmul.f32 %v1088, %v1166
    %v1175 = vmul.f32 %v1093, %v1167
    %v1176 = vmul.f32 %v1098, %v1168
    %v1177 = vmul.f32 %v1103, %v1169
    %v1178 = vmul.f32 %v1108, %v1170
    %v1179 = vmul.f32 %v1113, %v1171
    %v1180 = vmul.f32 %v1118, %v1172
    %v1181 = vmul.f32 %v1123, %v1173
    %v1183 = vsel %vm660, %v1174, 0
    %v1186 = vsel %vm660, %v1175, 0
    %v1189 = vsel %vm660, %v1176, 0
    %v1192 = vsel %vm660, %v1177, 0
    %v1195 = vsel %vm660, %v1178, 0
    %v1198 = vsel %vm660, %v1179, 0
    %v1201 = vsel %vm660, %v1180, 0
    %v1204 = vsel %vm660, %v1181, 0
    %1206 = vmatprep.subr.mxu0 0.0
    %1207 = vmatpush1.xpose.msra.mxu0 0.0
    %1208 = vmatprep.subr.mxu0 0.0
    %1209 = vmatpush1.xpose.msra.mxu0 0.0
    %1210 = vmatprep.subr.mxu0 0.0
    %1211 = vmatpush1.xpose.msra.mxu0 0.0
    %1212 = vmatprep.subr.mxu0 0.0
    %1213 = vmatpush1.xpose.msra.mxu0 0.0
    %1214 = vmatprep.subr.mxu0 0.0
    %1215 = vmatpush1.xpose.msra.mxu0 0.0
    %1216 = vmatprep.subr.mxu0 0.0
    %1217 = vmatpush1.xpose.msra.mxu0 0.0
    %1218 = vmatprep.subr.mxu0 0.0
    %1219 = vmatpush1.xpose.msra.mxu0 0.0
    %1220 = vmatprep.subr.mxu0 0.0
    %1221 = vmatpush1.xpose.msra.mxu0 0.0
    %1222 = vmatprep.subr.mxu0 0.0
    %1223 = vmatpush1.xpose.msra.mxu0 %v731
    %1224 = vmatprep.subr.mxu0 0.0
    %1225 = vmatpush1.xpose.msra.mxu0 %v728
    %1226 = vmatprep.subr.mxu0 0.0
    %1227 = vmatpush1.xpose.msra.mxu0 %v725
    %1228 = vmatprep.subr.mxu0 0.0
    %1229 = vmatpush1.xpose.msra.mxu0 %v722
    %1230 = vmatprep.subr.mxu0 0.0
    %1231 = vmatpush1.xpose.msra.mxu0 %v719
    %1232 = vmatprep.subr.mxu0 0.0
    %1233 = vmatpush1.xpose.msra.mxu0 %v716
    %1234 = vmatprep.subr.mxu0 0.0
    %1235 = vmatpush1.xpose.msra.mxu0 %v713
    %1236 = vmatprep.subr.mxu0 0.0
    %1237 = vmatpush1.xpose.msra.mxu0 %v710
    %1238 = vmatprep.subr.mxu0 0.0
    %1239 = vmatpush2.xpose.msra.mxu0 0.0
    %1240 = vmatprep.subr.mxu0 0.0
    %1241 = vmatpush2.xpose.msra.mxu0 0.0
    %1242 = vmatprep.subr.mxu0 0.0
    %1243 = vmatpush2.xpose.msra.mxu0 0.0
    %1244 = vmatprep.subr.mxu0 0.0
    %1245 = vmatpush2.xpose.msra.mxu0 0.0
    %1246 = vmatprep.subr.mxu0 0.0
    %1247 = vmatpush2.xpose.msra.mxu0 0.0
    %1248 = vmatprep.subr.mxu0 0.0
    %1249 = vmatpush2.xpose.msra.mxu0 0.0
    %1250 = vmatprep.subr.mxu0 0.0
    %1251 = vmatpush2.xpose.msra.mxu0 0.0
    %1252 = vmatprep.subr.mxu0 0.0
    %1253 = vmatpush2.xpose.msra.mxu0 0.0
    %1254 = vmatprep.subr.mxu0 0.0
    %1255 = vmatpush2.xpose.msra.mxu0 0.0
    %1256 = vmatprep.subr.mxu0 0.0
    %1257 = vmatpush2.xpose.msra.mxu0 0.0
    %1258 = vmatprep.subr.mxu0 0.0
    %1259 = vmatpush2.xpose.msra.mxu0 0.0
    %1260 = vmatprep.subr.mxu0 0.0
    %1261 = vmatpush2.xpose.msra.mxu0 0.0
    %1262 = vmatprep.subr.mxu0 0.0
    %1263 = vmatpush2.xpose.msra.mxu0 0.0
    %1264 = vmatprep.subr.mxu0 0.0
    %1265 = vmatpush2.xpose.msra.mxu0 0.0
    %1266 = vmatprep.subr.mxu0 0.0
    %1267 = vmatpush2.xpose.msra.mxu0 0.0
    %1268 = vmatprep.subr.mxu0 0.0
    %1269 = vmatpush2.xpose.msra.mxu0 0.0
    %1270 = vmatprep.mubr.f32.mxu0 0.0
    %1271 = vmatmul.mubr.f32.gmra.mxu0 %v1183
    %v1272 = vpop.f32.mrf.mxu0
    %v1273 = vadd.f32 0.0, %v1272
    %v1274 = vpop.f32.mrf.mxu0
    %1275 = vmatprep.mubr.f32.mxu0 0.0
    %1276 = vmatmul.mubr.f32.gmra.mxu0 %v1186
    %v1277 = vpop.f32.mrf.mxu0
    %v1278 = vadd.f32 0.0, %v1277
    %v1279 = vpop.f32.mrf.mxu0
    %1280 = vmatprep.mubr.f32.mxu0 0.0
    %1281 = vmatmul.mubr.f32.gmra.mxu0 %v1189
    %v1282 = vpop.f32.mrf.mxu0
    %v1283 = vadd.f32 0.0, %v1282
    %v1284 = vpop.f32.mrf.mxu0
    %1285 = vmatprep.mubr.f32.mxu0 0.0
    %1286 = vmatmul.mubr.f32.gmra.mxu0 %v1192
    %v1287 = vpop.f32.mrf.mxu0
    %v1288 = vadd.f32 0.0, %v1287
    %v1289 = vpop.f32.mrf.mxu0
    %1290 = vmatprep.mubr.f32.mxu0 0.0
    %1291 = vmatmul.mubr.f32.gmra.mxu0 %v1195
    %v1292 = vpop.f32.mrf.mxu0
    %v1293 = vadd.f32 0.0, %v1292
    %v1294 = vpop.f32.mrf.mxu0
    %1295 = vmatprep.mubr.f32.mxu0 0.0
    %1296 = vmatmul.mubr.f32.gmra.mxu0 %v1198
    %v1297 = vpop.f32.mrf.mxu0
    %v1298 = vadd.f32 0.0, %v1297
    %v1299 = vpop.f32.mrf.mxu0
    %1300 = vmatprep.mubr.f32.mxu0 0.0
    %1301 = vmatmul.mubr.f32.gmra.mxu0 %v1201
    %v1302 = vpop.f32.mrf.mxu0
    %v1303 = vadd.f32 0.0, %v1302
    %v1304 = vpop.f32.mrf.mxu0
    %1305 = vmatprep.mubr.f32.mxu0 0.0
    %1306 = vmatmul.mubr.f32.gmra.mxu0 %v1204
    %v1307 = vpop.f32.mrf.mxu0
    %v1308 = vadd.f32 0.0, %v1307
    %v1309 = vpop.f32.mrf.mxu0
    %1310 = vdwg.mxu0
    %v1311 = vmul.f32 %v800, 3.3333333
    %v1312 = vmul.f32 %v805, 3.3333333
    %v1313 = vmul.f32 %v810, 3.3333333
    %v1314 = vmul.f32 %v815, 3.3333333
    %v1315 = vmul.f32 %v820, 3.3333333
    %v1316 = vmul.f32 %v825, 3.3333333
    %v1317 = vmul.f32 %v830, 3.3333333
    %v1318 = vmul.f32 %v835, 3.3333333
    %v1319 = vmul.f32 %v1311, 1.442695
    %v1320 = vpow.pop %v1319
    %v1321 = vmul.f32 %v1312, 1.442695
    %v1322 = vpow.pop %v1321
    %v1323 = vmul.f32 %v1313, 1.442695
    %v1324 = vpow.pop %v1323
    %v1325 = vmul.f32 %v1314, 1.442695
    %v1326 = vpow.pop %v1325
    %v1327 = vmul.f32 %v1315, 1.442695
    %v1328 = vpow.pop %v1327
    %v1329 = vmul.f32 %v1316, 1.442695
    %v1330 = vpow.pop %v1329
    %v1331 = vmul.f32 %v1317, 1.442695
    %v1332 = vpow.pop %v1331
    %v1333 = vmul.f32 %v1318, 1.442695
    %v1334 = vpow.pop %v1333
    %v1335 = vmul.f32 %v1320, %v95
    %v1336 = vmul.f32 %v1322, %v96
    %v1337 = vmul.f32 %v1324, %v97
    %v1338 = vmul.f32 %v1326, %v98
    %v1339 = vmul.f32 %v1328, %v99
    %v1340 = vmul.f32 %v1330, %v100
    %v1341 = vmul.f32 %v1332, %v101
    %v1342 = vmul.f32 %v1334, %v102
    %v1343 = vsel %vm260, %v1335, 0.0
    %1344 = vadd.xlane.f32.xlu0 %v1343
    %v1345 = vpop.xlane.xlu0 %1344
    %v1346 = vsel %vm260, %v1336, 0.0
    %1347 = vadd.xlane.f32.xlu0 %v1346
    %v1348 = vpop.xlane.xlu0 %1347
    %v1349 = vsel %vm260, %v1337, 0.0
    %1350 = vadd.xlane.f32.xlu0 %v1349
    %v1351 = vpop.xlane.xlu0 %1350
    %v1352 = vsel %vm260, %v1338, 0.0
    %1353 = vadd.xlane.f32.xlu0 %v1352
    %v1354 = vpop.xlane.xlu0 %1353
    %v1355 = vsel %vm260, %v1339, 0.0
    %1356 = vadd.xlane.f32.xlu0 %v1355
    %v1357 = vpop.xlane.xlu0 %1356
    %v1358 = vsel %vm260, %v1340, 0.0
    %1359 = vadd.xlane.f32.xlu0 %v1358
    %v1360 = vpop.xlane.xlu0 %1359
    %v1361 = vsel %vm260, %v1341, 0.0
    %1362 = vadd.xlane.f32.xlu0 %v1361
    %v1363 = vpop.xlane.xlu0 %1362
    %v1364 = vsel %vm260, %v1342, 0.0
    %1365 = vadd.xlane.f32.xlu0 %v1364
    %v1366 = vpop.xlane.xlu0 %1365
    %v1367 = vadd.f32 %v1345, %v1348
    %v1368 = vadd.f32 %v1367, %v1351
    %v1369 = vadd.f32 %v1368, %v1354
    %v1370 = vadd.f32 %v1369, %v1357
    %v1371 = vadd.f32 %v1370, %v1360
    %v1372 = vadd.f32 %v1371, %v1363
    %v1373 = vadd.f32 %v1372, %v1366
    %v1374 = vrot.slane %v1373, 4
    %v1375 = vadd.f32 %v1373, %v1374
    %v1376 = vrot.slane %v1375, 2
    %v1377 = vadd.f32 %v1375, %v1376
    %v1378 = vrot.slane %v1377, 1
    %v1379 = vadd.f32 %v1377, %v1378
    %v1380 = vmul.f32 %v1320, %v103
    %v1381 = vmul.f32 %v1322, %v104
    %v1382 = vmul.f32 %v1324, %v105
    %v1383 = vmul.f32 %v1326, %v106
    %v1384 = vmul.f32 %v1328, %v107
    %v1385 = vmul.f32 %v1330, %v108
    %v1386 = vmul.f32 %v1332, %v109
    %v1387 = vmul.f32 %v1334, %v110
    %v1388 = vsel %vm260, %v1380, 0.0
    %1389 = vadd.xlane.f32.xlu0 %v1388
    %v1390 = vpop.xlane.xlu0 %1389
    %v1391 = vsel %vm260, %v1381, 0.0
    %1392 = vadd.xlane.f32.xlu0 %v1391
    %v1393 = vpop.xlane.xlu0 %1392
    %v1394 = vsel %vm260, %v1382, 0.0
    %1395 = vadd.xlane.f32.xlu0 %v1394
    %v1396 = vpop.xlane.xlu0 %1395
    %v1397 = vsel %vm260, %v1383, 0.0
    %1398 = vadd.xlane.f32.xlu0 %v1397
    %v1399 = vpop.xlane.xlu0 %1398
    %v1400 = vsel %vm260, %v1384, 0.0
    %1401 = vadd.xlane.f32.xlu0 %v1400
    %v1402 = vpop.xlane.xlu0 %1401
    %v1403 = vsel %vm260, %v1385, 0.0
    %1404 = vadd.xlane.f32.xlu0 %v1403
    %v1405 = vpop.xlane.xlu0 %1404
    %v1406 = vsel %vm260, %v1386, 0.0
    %1407 = vadd.xlane.f32.xlu0 %v1406
    %v1408 = vpop.xlane.xlu0 %1407
    %v1409 = vsel %vm260, %v1387, 0.0
    %1410 = vadd.xlane.f32.xlu0 %v1409
    %v1411 = vpop.xlane.xlu0 %1410
    %v1412 = vadd.f32 %v1390, %v1393
    %v1413 = vadd.f32 %v1412, %v1396
    %v1414 = vadd.f32 %v1413, %v1399
    %v1415 = vadd.f32 %v1414, %v1402
    %v1416 = vadd.f32 %v1415, %v1405
    %v1417 = vadd.f32 %v1416, %v1408
    %v1418 = vadd.f32 %v1417, %v1411
    %v1419 = vrot.slane %v1418, 4
    %v1420 = vadd.f32 %v1418, %v1419
    %v1421 = vrot.slane %v1420, 2
    %v1422 = vadd.f32 %v1420, %v1421
    %v1423 = vrot.slane %v1422, 1
    %v1424 = vadd.f32 %v1422, %v1423
    %v1425 = vmul.f32 %v1273, %v111
    %v1426 = vmul.f32 %v1278, %v112
    %v1427 = vmul.f32 %v1283, %v113
    %v1428 = vmul.f32 %v1288, %v114
    %v1429 = vmul.f32 %v1293, %v115
    %v1430 = vmul.f32 %v1298, %v116
    %v1431 = vmul.f32 %v1303, %v117
    %v1432 = vmul.f32 %v1308, %v118
    %v1433 = vsel %vm260, %v1425, 0.0
    %1434 = vadd.xlane.f32.xlu0 %v1433
    %v1435 = vpop.xlane.xlu0 %1434
    %v1436 = vsel %vm260, %v1426, 0.0
    %1437 = vadd.xlane.f32.xlu0 %v1436
    %v1438 = vpop.xlane.xlu0 %1437
    %v1439 = vsel %vm260, %v1427, 0.0
    %1440 = vadd.xlane.f32.xlu0 %v1439
    %v1441 = vpop.xlane.xlu0 %1440
    %v1442 = vsel %vm260, %v1428, 0.0
    %1443 = vadd.xlane.f32.xlu0 %v1442
    %v1444 = vpop.xlane.xlu0 %1443
    %v1445 = vsel %vm260, %v1429, 0.0
    %1446 = vadd.xlane.f32.xlu0 %v1445
    %v1447 = vpop.xlane.xlu0 %1446
    %v1448 = vsel %vm260, %v1430, 0.0
    %1449 = vadd.xlane.f32.xlu0 %v1448
    %v1450 = vpop.xlane.xlu0 %1449
    %v1451 = vsel %vm260, %v1431, 0.0
    %1452 = vadd.xlane.f32.xlu0 %v1451
    %v1453 = vpop.xlane.xlu0 %1452
    %v1454 = vsel %vm260, %v1432, 0.0
    %1455 = vadd.xlane.f32.xlu0 %v1454
    %v1456 = vpop.xlane.xlu0 %1455
    %v1457 = vadd.f32 %v1435, %v1438
    %v1458 = vadd.f32 %v1457, %v1441
    %v1459 = vadd.f32 %v1458, %v1444
    %v1460 = vadd.f32 %v1459, %v1447
    %v1461 = vadd.f32 %v1460, %v1450
    %v1462 = vadd.f32 %v1461, %v1453
    %v1463 = vadd.f32 %v1462, %v1456
    %v1464 = vrot.slane %v1463, 4
    %v1465 = vadd.f32 %v1463, %v1464
    %v1466 = vrot.slane %v1465, 2
    %v1467 = vadd.f32 %v1465, %v1466
    %v1468 = vrot.slane %v1467, 1
    %v1469 = vadd.f32 %v1467, %v1468
    %v1470 = vrcp.pop %v1424
    %v1471 = vmul.f32 %v1379, %v1470
    %v1472 = vlog2.pop %v1471
    %v1473 = vmul.f32 %v1472, 0.6931472
    %v1474 = vsub.f32 0.0, %v1473
    %v1475 = vsub.f32 0.0, %v1469
    %v1476 = vmul.f32 %v1475, %v119
    %v1477 = vmul.f32 %v1474, %v1476
    %1479 = vset.pattern.permute.xlu0 0
    %1480 = vperm.xlu0 %1479, %v1477
    %v1481 = vpop.permute.xlu0 %1480
    %v1483 = vlaneseq
    %v1484 = vshrl.u32 %v1483, 7
    %v1485 = vsub.s32 0, %v1484
    %v1486 = vrot.slane %v1481, %v1485
    %1487 = vst [vmem:[#allocation3] sm:$0x1] %v1486
    // Predicated region
    $region62: #{pixel_cl_forward.1} parent=1 // pred_check
      _
    $region63: #{pixel_cl_forward.1} parent=1 // pred_check_branch
      %1489 = sbr.rel (0) target = $region65
    $region64: #{pixel_cl_forward.1} parent=1 // pred_region
      %s1491 = ssub.s32 16, 16
      %1492 = vsyncadd [#allocation4], %s1491
      %s1494 = sshll.u32 [#allocation3], 4
      %s1495 = int_to_ptr.vmem [resolvable:$true] %s1494
      %1497 = dma.vmem_to_hbm [thread:$0]  %s1495, 16, %s15, [#allocation4]
    $region65: #{pixel_cl_forward.1} parent=1 // pred_fallthru
      _
    // Predicated region
    $region66: #{pixel_cl_forward.1} parent=1 // pred_check
      _
    $region67: #{pixel_cl_forward.1} parent=1 // pred_check_branch
      %1499 = sbr.rel (0) target = $region69
    $region68: #{pixel_cl_forward.1} parent=1 // pred_region
      %1500 = dma.done [#allocation4], 16
    $region69: #{pixel_cl_forward.1} parent=1 // pred_fallthru
      _
    %1501 = vsyncpa [#allocation4], 1

</llo_original>
